<compile_context>
chip_gen: v7x
topology: tpu7x:2x2x1
jax: 0.10.0
libtpu: 0.0.40
codegen_flags: <defaults>
</compile_context>

<pallas_src>
import jax
import jax.numpy as jnp
from jax.experimental import pallas as pl
from jax.experimental.pallas import tpu as pltpu

# ---- model dims (small, self-consistent) ----
B, S, D, H, V = 2, 8, 32, 4, 64
BS = B * S
DH = D // H            # head dim = 8
DFF = 4 * D            # MLP hidden = 128
VP = 128               # lane-dense padded vocab for the LM-head output
EPS = 1e-5             # LayerNorm eps (PyTorch default)

S_SHIFT = 3            # S  == 8 (power of two -> mask math uses shifts/ands)
DH_SHIFT = 3           # DH == 8
assert S == (1 << S_SHIFT) and DH == (1 << DH_SHIFT)

# rows of the packed small-vector buffer (each row padded to 128 lanes,
# every vector starts at lane offset 0)
(ROW_LN1_G, ROW_LN1_B, ROW_B_Q, ROW_B_K, ROW_B_V, ROW_B_O,
 ROW_LN2_G, ROW_LN2_B, ROW_B_1, ROW_B_2, ROW_LNF_G, ROW_LNF_B,
 ROW_B_LM) = range(13)
NSV = 13


def _layernorm(x, g, b):
    mu = jnp.mean(x, axis=-1, keepdims=True)
    var = jnp.mean((x - mu) ** 2, axis=-1, keepdims=True)
    return (x - mu) * jax.lax.rsqrt(var + EPS) * g + b


def transformer_lm_kernel(ids_ref, wte_ref, wpe_ref, wqkv_ref, wo_ref,
                          w1_ref, w2_ref, wlm_ref, sv_ref, out_ref, emb_ref):
    sv = sv_ref[...]                                   # (NSV, 128)
    ln1g = sv[ROW_LN1_G:ROW_LN1_G + 1, :D]
    ln1b = sv[ROW_LN1_B:ROW_LN1_B + 1, :D]
    bq   = sv[ROW_B_Q:ROW_B_Q + 1, :D]
    bk   = sv[ROW_B_K:ROW_B_K + 1, :D]
    bv   = sv[ROW_B_V:ROW_B_V + 1, :D]
    bo   = sv[ROW_B_O:ROW_B_O + 1, :D]
    ln2g = sv[ROW_LN2_G:ROW_LN2_G + 1, :D]
    ln2b = sv[ROW_LN2_B:ROW_LN2_B + 1, :D]
    b1   = sv[ROW_B_1:ROW_B_1 + 1, :DFF]
    b2   = sv[ROW_B_2:ROW_B_2 + 1, :D]
    lnfg = sv[ROW_LNF_G:ROW_LNF_G + 1, :D]
    lnfb = sv[ROW_LNF_B:ROW_LNF_B + 1, :D]
    blm  = sv[ROW_B_LM:ROW_B_LM + 1, :VP]

    # --- fused embedding gather (token ids live in SMEM via scalar prefetch) ---
    for i in range(BS):                                # static 16-row loop
        emb_ref[pl.ds(i, 1), :] = wte_ref[ids_ref[i]]  # dynamic row of (V,1,D)
    x = emb_ref[...] + wpe_ref[...]                    # (BS, D), wpe pre-tiled

    # --- LN1 + causal multi-head self-attention ---
    h = _layernorm(x, ln1g, ln1b)
    # Q/K/V via leading-axis indexed (3, D, D) weights: each projection lands at
    # lane offset 0 (no 96-lane slicing). 1/sqrt(DH) folded into wq/bq at pack time.
    q = jnp.dot(h, wqkv_ref[0], preferred_element_type=jnp.float32) + bq
    k = jnp.dot(h, wqkv_ref[1], preferred_element_type=jnp.float32) + bk
    v = jnp.dot(h, wqkv_ref[2], preferred_element_type=jnp.float32) + bv

    q3 = q.reshape(B, S, D)
    k3 = k.reshape(B, S, D)
    v3 = v.reshape(B, S, D)

    # Head selector matrices built once from 2-D iotas:
    #   reduce_m (D,H): sums each DH-lane group into its head's score.
    #   expand_m (H,D): replicates a per-head weight back over its DH lanes.
    d_i = jax.lax.broadcasted_iota(jnp.int32, (D, H), 0)
    h_i = jax.lax.broadcasted_iota(jnp.int32, (D, H), 1)
    reduce_m = ((d_i >> DH_SHIFT) == h_i).astype(jnp.float32)      # (D, H)
    h_j = jax.lax.broadcasted_iota(jnp.int32, (H, D), 0)
    d_j = jax.lax.broadcasted_iota(jnp.int32, (H, D), 1)
    expand_m = ((d_j >> DH_SHIFT) == h_j).astype(jnp.float32)      # (H, D)

    # Scores for all (b, i, j, h) with one VPU outer product + ONE MXU group-reduce
    # (replaces the 4-head loop of tiny K=8 matmuls).
    prod = q3[:, :, None, :] * k3[:, None, :, :]                   # (B, S, S, D)
    s2 = jnp.dot(prod.reshape(B * S * S, D), reduce_m,
                 preferred_element_type=jnp.float32)               # (B*S*S, H)

    # Causal mask applied multiplicatively AFTER exp; row-max subtraction dropped
    # (scores are tiny/bounded -> exp cannot overflow in f32, and masked entries
    # are exactly zero, so the math equals softmax with -inf masking).
    ridx = jax.lax.broadcasted_iota(jnp.int32, (B * S * S, H), 0)
    qpos = (ridx >> S_SHIFT) & (S - 1)
    kpos = ridx & (S - 1)
    keep = (qpos >= kpos).astype(jnp.float32)

    p4 = (jnp.exp(s2) * keep).reshape(B, S, S, H)
    denom = jnp.sum(p4, axis=2, keepdims=True)                     # (B, S, 1, H)
    p4 = p4 * pl.reciprocal(denom, approx=True)

    # Expand per-head weights back to lane groups (ONE matmul), weight V on the
    # VPU, then a single output-projection GEMM.
    p_exp = jnp.dot(p4.reshape(B * S * S, H), expand_m,
                    preferred_element_type=jnp.float32).reshape(B, S, S, D)
    ctx = jnp.sum(p_exp * v3[:, None, :, :], axis=2)               # (B, S, D)
    attn = jnp.dot(ctx.reshape(BS, D), wo_ref[...],
                   preferred_element_type=jnp.float32) + bo
    x = x + attn

    # --- LN2 + GELU MLP ---
    h = _layernorm(x, ln2g, ln2b)
    h = jnp.dot(h, w1_ref[...], preferred_element_type=jnp.float32) + b1
    # TODO(synk): PyTorch nn.GELU default is exact erf; tanh approximation used here.
    h = jax.nn.gelu(h, approximate=True)
    h = jnp.dot(h, w2_ref[...], preferred_element_type=jnp.float32) + b2
    x = x + h

    # --- final LN + LM head (lane-dense: V padded to VP=128, unmasked store) ---
    h = _layernorm(x, lnfg, lnfb)
    out_ref[...] = jnp.dot(h, wlm_ref[...],
                           preferred_element_type=jnp.float32) + blm


def init_params(seed=0):
    key = jax.random.PRNGKey(seed)
    keys = jax.random.split(key, 8)
    std = 0.02
    return {
        "wte":   std * jax.random.normal(keys[0], (V, D), jnp.float32),
        "wpe":   std * jax.random.normal(keys[1], (S, D), jnp.float32),
        "ln1_g": jnp.ones((D,), jnp.float32),
        "ln1_b": jnp.zeros((D,), jnp.float32),
        "w_qkv": std * jax.random.normal(keys[2], (D, 3 * D), jnp.float32),
        "b_qkv": jnp.zeros((3 * D,), jnp.float32),
        "w_o":   std * jax.random.normal(keys[3], (D, D), jnp.float32),
        "b_o":   jnp.zeros((D,), jnp.float32),
        "ln2_g": jnp.ones((D,), jnp.float32),
        "ln2_b": jnp.zeros((D,), jnp.float32),
        "w_1":   std * jax.random.normal(keys[4], (D, DFF), jnp.float32),
        "b_1":   jnp.zeros((DFF,), jnp.float32),
        "w_2":   std * jax.random.normal(keys[5], (DFF, D), jnp.float32),
        "b_2":   jnp.zeros((D,), jnp.float32),
        "lnf_g": jnp.ones((D,), jnp.float32),
        "lnf_b": jnp.zeros((D,), jnp.float32),
        "w_lm":  std * jax.random.normal(keys[6], (D, V), jnp.float32),
        "b_lm":  jnp.zeros((V,), jnp.float32),
    }


def _pad_row(vec):
    vec = vec.reshape(-1).astype(jnp.float32)
    return jnp.zeros((VP,), jnp.float32).at[:vec.shape[0]].set(vec)


def pack_params(params):
    """One-time repacking of params into kernel layouts (hoisted off the hot path)."""
    scale = 1.0 / (DH ** 0.5)
    wq = params["w_qkv"][:, :D] * scale                  # fold 1/sqrt(DH) into Q
    wk = params["w_qkv"][:, D:2 * D]
    wv = params["w_qkv"][:, 2 * D:]
    bqkv = params["b_qkv"]
    bq, bk, bv = bqkv[:D] * scale, bqkv[D:2 * D], bqkv[2 * D:]

    wqkv3 = jnp.stack([wq, wk, wv], axis=0)              # (3, D, D)
    wlm_p = jnp.zeros((D, VP), jnp.float32).at[:, :V].set(params["w_lm"])
    wte3 = params["wte"].reshape(V, 1, D)                # gather source
    wpe_t = jnp.tile(params["wpe"], (B, 1))              # (B*S, D) pre-tiled

    small_rows = [params["ln1_g"], params["ln1_b"], bq, bk, bv, params["b_o"],
                  params["ln2_g"], params["ln2_b"], params["b_1"], params["b_2"],
                  params["lnf_g"], params["lnf_b"], params["b_lm"]]
    small = jnp.stack([_pad_row(r) for r in small_rows], axis=0)   # (NSV, 128)
    assert small.shape == (NSV, VP)

    return {"wte3": wte3, "wpe_t": wpe_t, "wqkv3": wqkv3, "wo": params["w_o"],
            "w1": params["w_1"], "w2": params["w_2"], "wlm_p": wlm_p,
            "small": small}


@jax.jit
def transformer_lm_forward(token_ids, packed):
    ids = token_ids.reshape(BS).astype(jnp.int32)

    grid_spec = pltpu.PrefetchScalarGridSpec(
        num_scalar_prefetch=1,                 # token ids -> SMEM
        grid=(1,),                             # single invocation, all of B*S
        in_specs=[pl.BlockSpec(memory_space=pltpu.MemorySpace.VMEM)
                  for _ in range(8)],          # whole arrays resident in VMEM
        out_specs=pl.BlockSpec(memory_space=pltpu.MemorySpace.VMEM),
        scratch_shapes=[pltpu.VMEM((BS, D), jnp.float32)],   # gathered embeddings
    )

    # NOTE(v7x): at realistic B*S, switch grid to (B,) with
    # dimension_semantics=("parallel",) to split across the two TensorCores.
    logits_p = pl.pallas_call(
        transformer_lm_kernel,
        out_shape=jax.ShapeDtypeStruct((BS, VP), jnp.float32),
        grid_spec=grid_spec,
        compiler_params=pltpu.CompilerParams(
            dimension_semantics=("arbitrary",)),
        cost_estimate=pl.CostEstimate(flops=660_000, transcendentals=3_300,
                                      bytes_accessed=92_000),
    )(ids, packed["wte3"], packed["wpe_t"], packed["wqkv3"], packed["wo"],
      packed["w1"], packed["w2"], packed["wlm_p"], packed["small"])

    return logits_p[:, :V].reshape(B, S, V)


if __name__ == "__main__":
    params = init_params(seed=0)
    packed = pack_params(params)               # one-time packing, outside jit hot path

    key = jax.random.PRNGKey(0)
    token_ids = jax.random.randint(key, (B, S), 0, V, dtype=jnp.int32)

    logits = transformer_lm_forward(token_ids, packed)
    jax.block_until_ready(logits)
    assert logits.shape == (B, S, V) and logits.dtype == jnp.float32
    assert bool(jnp.all(jnp.isfinite(logits)))
    print("KERNEL_OK")
</pallas_src>

<mosaic_0001>
module attributes {stable_mosaic.version = 11 : i64} {
  func.func @transformer_lm_kernel(%arg0: i32, %arg1: memref<16xi32, #tpu.memory_space<smem>>, %arg2: memref<64x1x32xf32, #tpu.memory_space<vmem>>, %arg3: memref<16x32xf32, #tpu.memory_space<vmem>>, %arg4: memref<3x32x32xf32, #tpu.memory_space<vmem>>, %arg5: memref<32x32xf32, #tpu.memory_space<vmem>>, %arg6: memref<32x128xf32, #tpu.memory_space<vmem>>, %arg7: memref<128x32xf32, #tpu.memory_space<vmem>>, %arg8: memref<32x128xf32, #tpu.memory_space<vmem>>, %arg9: memref<13x128xf32, #tpu.memory_space<vmem>>, %arg10: memref<16x128xf32, #tpu.memory_space<vmem>>, %arg11: memref<16x32xf32, #tpu.memory_space<vmem>>) attributes {dimension_semantics = [#tpu.dimension_semantics<arbitrary>], iteration_bounds = array<i64: 1>, scalar_prefetch = 1 : i64, scratch_operands = 1 : i64, tpu.core_type = #tpu.core_type<tc>, window_params = [{pipeline_mode = #tpu.pipeline_mode<synchronous>, transform_indices = @transform_0, window_bounds = array<i64: 64, 1, 32>}, {pipeline_mode = #tpu.pipeline_mode<synchronous>, transform_indices = @transform_1, window_bounds = array<i64: 16, 32>}, {pipeline_mode = #tpu.pipeline_mode<synchronous>, transform_indices = @transform_2, window_bounds = array<i64: 3, 32, 32>}, {pipeline_mode = #tpu.pipeline_mode<synchronous>, transform_indices = @transform_3, window_bounds = array<i64: 32, 32>}, {pipeline_mode = #tpu.pipeline_mode<synchronous>, transform_indices = @transform_4, window_bounds = array<i64: 32, 128>}, {pipeline_mode = #tpu.pipeline_mode<synchronous>, transform_indices = @transform_5, window_bounds = array<i64: 128, 32>}, {pipeline_mode = #tpu.pipeline_mode<synchronous>, transform_indices = @transform_6, window_bounds = array<i64: 32, 128>}, {pipeline_mode = #tpu.pipeline_mode<synchronous>, transform_indices = @transform_7, window_bounds = array<i64: 13, 128>}, {pipeline_mode = #tpu.pipeline_mode<synchronous>, transform_indices = @transform_8, window_bounds = array<i64: 16, 128>}]} {
    %c0 = arith.constant 0 : index
    %c0_0 = arith.constant 0 : index
    %0 = vector.load %arg9[%c0, %c0_0] : memref<13x128xf32, #tpu.memory_space<vmem>>, vector<13x128xf32>
    %1 = vector.extract_strided_slice %0 {offsets = [0, 0], sizes = [1, 32], strides = [1, 1]} : vector<13x128xf32> to vector<1x32xf32>
    %2 = vector.extract_strided_slice %0 {offsets = [1, 0], sizes = [1, 32], strides = [1, 1]} : vector<13x128xf32> to vector<1x32xf32>
    %3 = vector.extract_strided_slice %0 {offsets = [2, 0], sizes = [1, 32], strides = [1, 1]} : vector<13x128xf32> to vector<1x32xf32>
    %4 = vector.extract_strided_slice %0 {offsets = [3, 0], sizes = [1, 32], strides = [1, 1]} : vector<13x128xf32> to vector<1x32xf32>
    %5 = vector.extract_strided_slice %0 {offsets = [4, 0], sizes = [1, 32], strides = [1, 1]} : vector<13x128xf32> to vector<1x32xf32>
    %6 = vector.extract_strided_slice %0 {offsets = [5, 0], sizes = [1, 32], strides = [1, 1]} : vector<13x128xf32> to vector<1x32xf32>
    %7 = vector.extract_strided_slice %0 {offsets = [6, 0], sizes = [1, 32], strides = [1, 1]} : vector<13x128xf32> to vector<1x32xf32>
    %8 = vector.extract_strided_slice %0 {offsets = [7, 0], sizes = [1, 32], strides = [1, 1]} : vector<13x128xf32> to vector<1x32xf32>
    %9 = vector.extract_strided_slice %0 {offsets = [8, 0], sizes = [1, 128], strides = [1, 1]} : vector<13x128xf32> to vector<1x128xf32>
    %10 = vector.extract_strided_slice %0 {offsets = [9, 0], sizes = [1, 32], strides = [1, 1]} : vector<13x128xf32> to vector<1x32xf32>
    %11 = vector.extract_strided_slice %0 {offsets = [10, 0], sizes = [1, 32], strides = [1, 1]} : vector<13x128xf32> to vector<1x32xf32>
    %12 = vector.extract_strided_slice %0 {offsets = [11, 0], sizes = [1, 32], strides = [1, 1]} : vector<13x128xf32> to vector<1x32xf32>
    %13 = vector.extract_strided_slice %0 {offsets = [12, 0], sizes = [1, 128], strides = [1, 1]} : vector<13x128xf32> to vector<1x128xf32>
    %c0_1 = arith.constant 0 : index
    %14 = memref.load %arg1[%c0_1] : memref<16xi32, #tpu.memory_space<smem>>
    %15 = arith.index_cast %14 : i32 to index
    %c0_2 = arith.constant 0 : index
    %c0_3 = arith.constant 0 : index
    %16 = vector.load %arg2[%15, %c0_2, %c0_3] : memref<64x1x32xf32, #tpu.memory_space<vmem>>, vector<1x1x32xf32>
    %17 = vector.shape_cast %16 : vector<1x1x32xf32> to vector<1x32xf32>
    %c0_4 = arith.constant 0 : index
    %c0_5 = arith.constant 0 : index
    %18 = vector.load %arg11[%c0_4, %c0_5] : memref<16x32xf32, #tpu.memory_space<vmem>>, vector<1x32xf32>
    tpu.vector_store %arg11[%c0_4, %c0_5], %17 {strides = array<i32>} : memref<16x32xf32, #tpu.memory_space<vmem>>, vector<1x32xf32>,
    %c1 = arith.constant 1 : index
    %19 = memref.load %arg1[%c1] : memref<16xi32, #tpu.memory_space<smem>>
    %20 = arith.index_cast %19 : i32 to index
    %c0_6 = arith.constant 0 : index
    %c0_7 = arith.constant 0 : index
    %21 = vector.load %arg2[%20, %c0_6, %c0_7] : memref<64x1x32xf32, #tpu.memory_space<vmem>>, vector<1x1x32xf32>
    %22 = vector.shape_cast %21 : vector<1x1x32xf32> to vector<1x32xf32>
    %c1_8 = arith.constant 1 : index
    %c0_9 = arith.constant 0 : index
    %23 = vector.load %arg11[%c1_8, %c0_9] : memref<16x32xf32, #tpu.memory_space<vmem>>, vector<1x32xf32>
    tpu.vector_store %arg11[%c1_8, %c0_9], %22 {strides = array<i32>} : memref<16x32xf32, #tpu.memory_space<vmem>>, vector<1x32xf32>,
    %c2 = arith.constant 2 : index
    %24 = memref.load %arg1[%c2] : memref<16xi32, #tpu.memory_space<smem>>
    %25 = arith.index_cast %24 : i32 to index
    %c0_10 = arith.constant 0 : index
    %c0_11 = arith.constant 0 : index
    %26 = vector.load %arg2[%25, %c0_10, %c0_11] : memref<64x1x32xf32, #tpu.memory_space<vmem>>, vector<1x1x32xf32>
    %27 = vector.shape_cast %26 : vector<1x1x32xf32> to vector<1x32xf32>
    %c2_12 = arith.constant 2 : index
    %c0_13 = arith.constant 0 : index
    %28 = vector.load %arg11[%c2_12, %c0_13] : memref<16x32xf32, #tpu.memory_space<vmem>>, vector<1x32xf32>
    tpu.vector_store %arg11[%c2_12, %c0_13], %27 {strides = array<i32>} : memref<16x32xf32, #tpu.memory_space<vmem>>, vector<1x32xf32>,
    %c3 = arith.constant 3 : index
    %29 = memref.load %arg1[%c3] : memref<16xi32, #tpu.memory_space<smem>>
    %30 = arith.index_cast %29 : i32 to index
    %c0_14 = arith.constant 0 : index
    %c0_15 = arith.constant 0 : index
    %31 = vector.load %arg2[%30, %c0_14, %c0_15] : memref<64x1x32xf32, #tpu.memory_space<vmem>>, vector<1x1x32xf32>
    %32 = vector.shape_cast %31 : vector<1x1x32xf32> to vector<1x32xf32>
    %c3_16 = arith.constant 3 : index
    %c0_17 = arith.constant 0 : index
    %33 = vector.load %arg11[%c3_16, %c0_17] : memref<16x32xf32, #tpu.memory_space<vmem>>, vector<1x32xf32>
    tpu.vector_store %arg11[%c3_16, %c0_17], %32 {strides = array<i32>} : memref<16x32xf32, #tpu.memory_space<vmem>>, vector<1x32xf32>,
    %c4 = arith.constant 4 : index
    %34 = memref.load %arg1[%c4] : memref<16xi32, #tpu.memory_space<smem>>
    %35 = arith.index_cast %34 : i32 to index
    %c0_18 = arith.constant 0 : index
    %c0_19 = arith.constant 0 : index
    %36 = vector.load %arg2[%35, %c0_18, %c0_19] : memref<64x1x32xf32, #tpu.memory_space<vmem>>, vector<1x1x32xf32>
    %37 = vector.shape_cast %36 : vector<1x1x32xf32> to vector<1x32xf32>
    %c4_20 = arith.constant 4 : index
    %c0_21 = arith.constant 0 : index
    %38 = vector.load %arg11[%c4_20, %c0_21] : memref<16x32xf32, #tpu.memory_space<vmem>>, vector<1x32xf32>
    tpu.vector_store %arg11[%c4_20, %c0_21], %37 {strides = array<i32>} : memref<16x32xf32, #tpu.memory_space<vmem>>, vector<1x32xf32>,
    %c5 = arith.constant 5 : index
    %39 = memref.load %arg1[%c5] : memref<16xi32, #tpu.memory_space<smem>>
    %40 = arith.index_cast %39 : i32 to index
    %c0_22 = arith.constant 0 : index
    %c0_23 = arith.constant 0 : index
    %41 = vector.load %arg2[%40, %c0_22, %c0_23] : memref<64x1x32xf32, #tpu.memory_space<vmem>>, vector<1x1x32xf32>
    %42 = vector.shape_cast %41 : vector<1x1x32xf32> to vector<1x32xf32>
    %c5_24 = arith.constant 5 : index
    %c0_25 = arith.constant 0 : index
    %43 = vector.load %arg11[%c5_24, %c0_25] : memref<16x32xf32, #tpu.memory_space<vmem>>, vector<1x32xf32>
    tpu.vector_store %arg11[%c5_24, %c0_25], %42 {strides = array<i32>} : memref<16x32xf32, #tpu.memory_space<vmem>>, vector<1x32xf32>,
    %c6 = arith.constant 6 : index
    %44 = memref.load %arg1[%c6] : memref<16xi32, #tpu.memory_space<smem>>
    %45 = arith.index_cast %44 : i32 to index
    %c0_26 = arith.constant 0 : index
    %c0_27 = arith.constant 0 : index
    %46 = vector.load %arg2[%45, %c0_26, %c0_27] : memref<64x1x32xf32, #tpu.memory_space<vmem>>, vector<1x1x32xf32>
    %47 = vector.shape_cast %46 : vector<1x1x32xf32> to vector<1x32xf32>
    %c6_28 = arith.constant 6 : index
    %c0_29 = arith.constant 0 : index
    %48 = vector.load %arg11[%c6_28, %c0_29] : memref<16x32xf32, #tpu.memory_space<vmem>>, vector<1x32xf32>
    tpu.vector_store %arg11[%c6_28, %c0_29], %47 {strides = array<i32>} : memref<16x32xf32, #tpu.memory_space<vmem>>, vector<1x32xf32>,
    %c7 = arith.constant 7 : index
    %49 = memref.load %arg1[%c7] : memref<16xi32, #tpu.memory_space<smem>>
    %50 = arith.index_cast %49 : i32 to index
    %c0_30 = arith.constant 0 : index
    %c0_31 = arith.constant 0 : index
    %51 = vector.load %arg2[%50, %c0_30, %c0_31] : memref<64x1x32xf32, #tpu.memory_space<vmem>>, vector<1x1x32xf32>
    %52 = vector.shape_cast %51 : vector<1x1x32xf32> to vector<1x32xf32>
    %c7_32 = arith.constant 7 : index
    %c0_33 = arith.constant 0 : index
    %53 = vector.load %arg11[%c7_32, %c0_33] : memref<16x32xf32, #tpu.memory_space<vmem>>, vector<1x32xf32>
    tpu.vector_store %arg11[%c7_32, %c0_33], %52 {strides = array<i32>} : memref<16x32xf32, #tpu.memory_space<vmem>>, vector<1x32xf32>,
    %c8 = arith.constant 8 : index
    %54 = memref.load %arg1[%c8] : memref<16xi32, #tpu.memory_space<smem>>
    %55 = arith.index_cast %54 : i32 to index
    %c0_34 = arith.constant 0 : index
    %c0_35 = arith.constant 0 : index
    %56 = vector.load %arg2[%55, %c0_34, %c0_35] : memref<64x1x32xf32, #tpu.memory_space<vmem>>, vector<1x1x32xf32>
    %57 = vector.shape_cast %56 : vector<1x1x32xf32> to vector<1x32xf32>
    %c8_36 = arith.constant 8 : index
    %c0_37 = arith.constant 0 : index
    %58 = vector.load %arg11[%c8_36, %c0_37] : memref<16x32xf32, #tpu.memory_space<vmem>>, vector<1x32xf32>
    tpu.vector_store %arg11[%c8_36, %c0_37], %57 {strides = array<i32>} : memref<16x32xf32, #tpu.memory_space<vmem>>, vector<1x32xf32>,
    %c9 = arith.constant 9 : index
    %59 = memref.load %arg1[%c9] : memref<16xi32, #tpu.memory_space<smem>>
    %60 = arith.index_cast %59 : i32 to index
    %c0_38 = arith.constant 0 : index
    %c0_39 = arith.constant 0 : index
    %61 = vector.load %arg2[%60, %c0_38, %c0_39] : memref<64x1x32xf32, #tpu.memory_space<vmem>>, vector<1x1x32xf32>
    %62 = vector.shape_cast %61 : vector<1x1x32xf32> to vector<1x32xf32>
    %c9_40 = arith.constant 9 : index
    %c0_41 = arith.constant 0 : index
    %63 = vector.load %arg11[%c9_40, %c0_41] : memref<16x32xf32, #tpu.memory_space<vmem>>, vector<1x32xf32>
    tpu.vector_store %arg11[%c9_40, %c0_41], %62 {strides = array<i32>} : memref<16x32xf32, #tpu.memory_space<vmem>>, vector<1x32xf32>,
    %c10 = arith.constant 10 : index
    %64 = memref.load %arg1[%c10] : memref<16xi32, #tpu.memory_space<smem>>
    %65 = arith.index_cast %64 : i32 to index
    %c0_42 = arith.constant 0 : index
    %c0_43 = arith.constant 0 : index
    %66 = vector.load %arg2[%65, %c0_42, %c0_43] : memref<64x1x32xf32, #tpu.memory_space<vmem>>, vector<1x1x32xf32>
    %67 = vector.shape_cast %66 : vector<1x1x32xf32> to vector<1x32xf32>
    %c10_44 = arith.constant 10 : index
    %c0_45 = arith.constant 0 : index
    %68 = vector.load %arg11[%c10_44, %c0_45] : memref<16x32xf32, #tpu.memory_space<vmem>>, vector<1x32xf32>
    tpu.vector_store %arg11[%c10_44, %c0_45], %67 {strides = array<i32>} : memref<16x32xf32, #tpu.memory_space<vmem>>, vector<1x32xf32>,
    %c11 = arith.constant 11 : index
    %69 = memref.load %arg1[%c11] : memref<16xi32, #tpu.memory_space<smem>>
    %70 = arith.index_cast %69 : i32 to index
    %c0_46 = arith.constant 0 : index
    %c0_47 = arith.constant 0 : index
    %71 = vector.load %arg2[%70, %c0_46, %c0_47] : memref<64x1x32xf32, #tpu.memory_space<vmem>>, vector<1x1x32xf32>
    %72 = vector.shape_cast %71 : vector<1x1x32xf32> to vector<1x32xf32>
    %c11_48 = arith.constant 11 : index
    %c0_49 = arith.constant 0 : index
    %73 = vector.load %arg11[%c11_48, %c0_49] : memref<16x32xf32, #tpu.memory_space<vmem>>, vector<1x32xf32>
    tpu.vector_store %arg11[%c11_48, %c0_49], %72 {strides = array<i32>} : memref<16x32xf32, #tpu.memory_space<vmem>>, vector<1x32xf32>,
    %c12 = arith.constant 12 : index
    %74 = memref.load %arg1[%c12] : memref<16xi32, #tpu.memory_space<smem>>
    %75 = arith.index_cast %74 : i32 to index
    %c0_50 = arith.constant 0 : index
    %c0_51 = arith.constant 0 : index
    %76 = vector.load %arg2[%75, %c0_50, %c0_51] : memref<64x1x32xf32, #tpu.memory_space<vmem>>, vector<1x1x32xf32>
    %77 = vector.shape_cast %76 : vector<1x1x32xf32> to vector<1x32xf32>
    %c12_52 = arith.constant 12 : index
    %c0_53 = arith.constant 0 : index
    %78 = vector.load %arg11[%c12_52, %c0_53] : memref<16x32xf32, #tpu.memory_space<vmem>>, vector<1x32xf32>
    tpu.vector_store %arg11[%c12_52, %c0_53], %77 {strides = array<i32>} : memref<16x32xf32, #tpu.memory_space<vmem>>, vector<1x32xf32>,
    %c13 = arith.constant 13 : index
    %79 = memref.load %arg1[%c13] : memref<16xi32, #tpu.memory_space<smem>>
    %80 = arith.index_cast %79 : i32 to index
    %c0_54 = arith.constant 0 : index
    %c0_55 = arith.constant 0 : index
    %81 = vector.load %arg2[%80, %c0_54, %c0_55] : memref<64x1x32xf32, #tpu.memory_space<vmem>>, vector<1x1x32xf32>
    %82 = vector.shape_cast %81 : vector<1x1x32xf32> to vector<1x32xf32>
    %c13_56 = arith.constant 13 : index
    %c0_57 = arith.constant 0 : index
    %83 = vector.load %arg11[%c13_56, %c0_57] : memref<16x32xf32, #tpu.memory_space<vmem>>, vector<1x32xf32>
    tpu.vector_store %arg11[%c13_56, %c0_57], %82 {strides = array<i32>} : memref<16x32xf32, #tpu.memory_space<vmem>>, vector<1x32xf32>,
    %c14 = arith.constant 14 : index
    %84 = memref.load %arg1[%c14] : memref<16xi32, #tpu.memory_space<smem>>
    %85 = arith.index_cast %84 : i32 to index
    %c0_58 = arith.constant 0 : index
    %c0_59 = arith.constant 0 : index
    %86 = vector.load %arg2[%85, %c0_58, %c0_59] : memref<64x1x32xf32, #tpu.memory_space<vmem>>, vector<1x1x32xf32>
    %87 = vector.shape_cast %86 : vector<1x1x32xf32> to vector<1x32xf32>
    %c14_60 = arith.constant 14 : index
    %c0_61 = arith.constant 0 : index
    %88 = vector.load %arg11[%c14_60, %c0_61] : memref<16x32xf32, #tpu.memory_space<vmem>>, vector<1x32xf32>
    tpu.vector_store %arg11[%c14_60, %c0_61], %87 {strides = array<i32>} : memref<16x32xf32, #tpu.memory_space<vmem>>, vector<1x32xf32>,
    %c15 = arith.constant 15 : index
    %89 = memref.load %arg1[%c15] : memref<16xi32, #tpu.memory_space<smem>>
    %90 = arith.index_cast %89 : i32 to index
    %c0_62 = arith.constant 0 : index
    %c0_63 = arith.constant 0 : index
    %91 = vector.load %arg2[%90, %c0_62, %c0_63] : memref<64x1x32xf32, #tpu.memory_space<vmem>>, vector<1x1x32xf32>
    %92 = vector.shape_cast %91 : vector<1x1x32xf32> to vector<1x32xf32>
    %c15_64 = arith.constant 15 : index
    %c0_65 = arith.constant 0 : index
    %93 = vector.load %arg11[%c15_64, %c0_65] : memref<16x32xf32, #tpu.memory_space<vmem>>, vector<1x32xf32>
    tpu.vector_store %arg11[%c15_64, %c0_65], %92 {strides = array<i32>} : memref<16x32xf32, #tpu.memory_space<vmem>>, vector<1x32xf32>,
    %c0_66 = arith.constant 0 : index
    %c0_67 = arith.constant 0 : index
    %94 = vector.load %arg11[%c0_66, %c0_67] : memref<16x32xf32, #tpu.memory_space<vmem>>, vector<16x32xf32>
    %c0_68 = arith.constant 0 : index
    %c0_69 = arith.constant 0 : index
    %95 = vector.load %arg3[%c0_68, %c0_69] : memref<16x32xf32, #tpu.memory_space<vmem>>, vector<16x32xf32>
    %96 = arith.addf %94, %95 : vector<16x32xf32>
    %cst = arith.constant dense<0.000000e+00> : vector<16xf32>
    %97 = vector.multi_reduction <add>, %96, %cst [1] : vector<16x32xf32> to vector<16xf32>
    %98 = vector.shape_cast %97 : vector<16xf32> to vector<16x1xf32>
    %cst_70 = arith.constant 3.200000e+01 : f32
    %99 = vector.broadcast %cst_70 : f32 to vector<16x1xf32>
    %100 = arith.divf %98, %99 : vector<16x1xf32>
    %101 = vector.broadcast %100 : vector<16x1xf32> to vector<16x32xf32>
    %102 = arith.subf %96, %101 : vector<16x32xf32>
    %103 = arith.mulf %102, %102 : vector<16x32xf32>
    %cst_71 = arith.constant dense<0.000000e+00> : vector<16xf32>
    %104 = vector.multi_reduction <add>, %103, %cst_71 [1] : vector<16x32xf32> to vector<16xf32>
    %105 = vector.shape_cast %104 : vector<16xf32> to vector<16x1xf32>
    %cst_72 = arith.constant 3.200000e+01 : f32
    %106 = vector.broadcast %cst_72 : f32 to vector<16x1xf32>
    %107 = arith.divf %105, %106 : vector<16x1xf32>
    %108 = vector.broadcast %100 : vector<16x1xf32> to vector<16x32xf32>
    %109 = arith.subf %96, %108 : vector<16x32xf32>
    %cst_73 = arith.constant 9.99999974E-6 : f32
    %110 = vector.broadcast %cst_73 : f32 to vector<16x1xf32>
    %111 = arith.addf %107, %110 : vector<16x1xf32>
    %112 = math.rsqrt %111 : vector<16x1xf32>
    %113 = vector.broadcast %112 : vector<16x1xf32> to vector<16x32xf32>
    %114 = arith.mulf %109, %113 : vector<16x32xf32>
    %115 = vector.broadcast %1 : vector<1x32xf32> to vector<16x32xf32>
    %116 = arith.mulf %114, %115 : vector<16x32xf32>
    %117 = vector.broadcast %2 : vector<1x32xf32> to vector<16x32xf32>
    %118 = arith.addf %116, %117 : vector<16x32xf32>
    %c0_74 = arith.constant 0 : index
    %c0_75 = arith.constant 0 : index
    %c0_76 = arith.constant 0 : index
    %119 = vector.load %arg4[%c0_74, %c0_75, %c0_76] : memref<3x32x32xf32, #tpu.memory_space<vmem>>, vector<1x32x32xf32>
    %120 = vector.shape_cast %119 : vector<1x32x32xf32> to vector<32x32xf32>
    %cst_77 = arith.constant dense<0.000000e+00> : vector<16x32xf32>
    %121 = tpu.matmul %118, %120, %cst_77 {dimension_numbers = #tpu.dot_dimension_numbers<[1], [0], [0], [1], [0, 0, 1, 1], [], []>} : vector<16x32xf32>, vector<32x32xf32>, vector<16x32xf32> -> vector<16x32xf32>
    %122 = vector.broadcast %3 : vector<1x32xf32> to vector<16x32xf32>
    %123 = arith.addf %121, %122 : vector<16x32xf32>
    %c1_78 = arith.constant 1 : index
    %c0_79 = arith.constant 0 : index
    %c0_80 = arith.constant 0 : index
    %124 = vector.load %arg4[%c1_78, %c0_79, %c0_80] : memref<3x32x32xf32, #tpu.memory_space<vmem>>, vector<1x32x32xf32>
    %125 = vector.shape_cast %124 : vector<1x32x32xf32> to vector<32x32xf32>
    %cst_81 = arith.constant dense<0.000000e+00> : vector<16x32xf32>
    %126 = tpu.matmul %118, %125, %cst_81 {dimension_numbers = #tpu.dot_dimension_numbers<[1], [0], [0], [1], [0, 0, 1, 1], [], []>} : vector<16x32xf32>, vector<32x32xf32>, vector<16x32xf32> -> vector<16x32xf32>
    %127 = vector.broadcast %4 : vector<1x32xf32> to vector<16x32xf32>
    %128 = arith.addf %126, %127 : vector<16x32xf32>
    %c2_82 = arith.constant 2 : index
    %c0_83 = arith.constant 0 : index
    %c0_84 = arith.constant 0 : index
    %129 = vector.load %arg4[%c2_82, %c0_83, %c0_84] : memref<3x32x32xf32, #tpu.memory_space<vmem>>, vector<1x32x32xf32>
    %130 = vector.shape_cast %129 : vector<1x32x32xf32> to vector<32x32xf32>
    %cst_85 = arith.constant dense<0.000000e+00> : vector<16x32xf32>
    %131 = tpu.matmul %118, %130, %cst_85 {dimension_numbers = #tpu.dot_dimension_numbers<[1], [0], [0], [1], [0, 0, 1, 1], [], []>} : vector<16x32xf32>, vector<32x32xf32>, vector<16x32xf32> -> vector<16x32xf32>
    %132 = vector.broadcast %5 : vector<1x32xf32> to vector<16x32xf32>
    %133 = arith.addf %131, %132 : vector<16x32xf32>
    %134 = vector.shape_cast %123 : vector<16x32xf32> to vector<2x8x32xf32>
    %135 = vector.shape_cast %128 : vector<16x32xf32> to vector<2x8x32xf32>
    %136 = vector.shape_cast %133 : vector<16x32xf32> to vector<2x8x32xf32>
    %137 = tpu.iota {dimensions = array<i32: 0>} : vector<32x4xi32>
    %138 = tpu.iota {dimensions = array<i32: 1>} : vector<32x4xi32>
    %c3_i32 = arith.constant 3 : i32
    %139 = vector.broadcast %c3_i32 : i32 to vector<32x4xi32>
    %140 = arith.shrsi %137, %139 : vector<32x4xi32>
    %141 = arith.cmpi eq, %140, %138 : vector<32x4xi32>
    %142 = arith.extui %141 : vector<32x4xi1> to vector<32x4xi32>
    %143 = arith.sitofp %142 : vector<32x4xi32> to vector<32x4xf32>
    %144 = tpu.iota {dimensions = array<i32: 0>} : vector<4x32xi32>
    %145 = tpu.iota {dimensions = array<i32: 1>} : vector<4x32xi32>
    %c3_i32_86 = arith.constant 3 : i32
    %146 = vector.broadcast %c3_i32_86 : i32 to vector<4x32xi32>
    %147 = arith.shrsi %145, %146 : vector<4x32xi32>
    %148 = arith.cmpi eq, %147, %144 : vector<4x32xi32>
    %149 = arith.extui %148 : vector<4x32xi1> to vector<4x32xi32>
    %150 = arith.sitofp %149 : vector<4x32xi32> to vector<4x32xf32>
    %151 = vector.shape_cast %134 : vector<2x8x32xf32> to vector<2x8x1x32xf32>
    %152 = vector.shape_cast %135 : vector<2x8x32xf32> to vector<2x1x8x32xf32>
    %153 = vector.broadcast %151 : vector<2x8x1x32xf32> to vector<2x8x8x32xf32>
    %154 = vector.broadcast %152 : vector<2x1x8x32xf32> to vector<2x8x8x32xf32>
    %155 = arith.mulf %153, %154 : vector<2x8x8x32xf32>
    %156 = vector.shape_cast %155 : vector<2x8x8x32xf32> to vector<128x32xf32>
    %cst_87 = arith.constant dense<0.000000e+00> : vector<128x4xf32>
    %157 = tpu.matmul %156, %143, %cst_87 {dimension_numbers = #tpu.dot_dimension_numbers<[1], [0], [0], [1], [0, 0, 1, 1], [], []>} : vector<128x32xf32>, vector<32x4xf32>, vector<128x4xf32> -> vector<128x4xf32>
    %158 = tpu.iota {dimensions = array<i32: 0>} : vector<128x4xi32>
    %c3_i32_88 = arith.constant 3 : i32
    %159 = vector.broadcast %c3_i32_88 : i32 to vector<128x4xi32>
    %160 = arith.shrsi %158, %159 : vector<128x4xi32>
    %c7_i32 = arith.constant 7 : i32
    %161 = vector.broadcast %c7_i32 : i32 to vector<128x4xi32>
    %162 = arith.andi %160, %161 : vector<128x4xi32>
    %c7_i32_89 = arith.constant 7 : i32
    %163 = vector.broadcast %c7_i32_89 : i32 to vector<128x4xi32>
    %164 = arith.andi %158, %163 : vector<128x4xi32>
    %165 = arith.cmpi sge, %162, %164 : vector<128x4xi32>
    %166 = arith.extui %165 : vector<128x4xi1> to vector<128x4xi32>
    %167 = arith.sitofp %166 : vector<128x4xi32> to vector<128x4xf32>
    %168 = math.exp %157 : vector<128x4xf32>
    %169 = arith.mulf %168, %167 : vector<128x4xf32>
    %170 = vector.shape_cast %169 : vector<128x4xf32> to vector<2x8x8x4xf32>
    %cst_90 = arith.constant dense<0.000000e+00> : vector<2x8x4xf32>
    %171 = vector.multi_reduction <add>, %170, %cst_90 [2] : vector<2x8x8x4xf32> to vector<2x8x4xf32>
    %172 = vector.shape_cast %171 : vector<2x8x4xf32> to vector<2x8x1x4xf32>
    %173 = tpu.reciprocal %172 {approx = true} : vector<2x8x1x4xf32> -> vector<2x8x1x4xf32>
    %174 = vector.broadcast %173 : vector<2x8x1x4xf32> to vector<2x8x8x4xf32>
    %175 = arith.mulf %170, %174 : vector<2x8x8x4xf32>
    %176 = vector.shape_cast %175 : vector<2x8x8x4xf32> to vector<128x4xf32>
    %cst_91 = arith.constant dense<0.000000e+00> : vector<128x32xf32>
    %177 = tpu.matmul %176, %150, %cst_91 {dimension_numbers = #tpu.dot_dimension_numbers<[1], [0], [0], [1], [0, 0, 1, 1], [], []>} : vector<128x4xf32>, vector<4x32xf32>, vector<128x32xf32> -> vector<128x32xf32>
    %178 = vector.shape_cast %177 : vector<128x32xf32> to vector<2x8x8x32xf32>
    %179 = vector.shape_cast %136 : vector<2x8x32xf32> to vector<2x1x8x32xf32>
    %180 = vector.broadcast %179 : vector<2x1x8x32xf32> to vector<2x8x8x32xf32>
    %181 = arith.mulf %178, %180 : vector<2x8x8x32xf32>
    %cst_92 = arith.constant dense<0.000000e+00> : vector<2x8x32xf32>
    %182 = vector.multi_reduction <add>, %181, %cst_92 [2] : vector<2x8x8x32xf32> to vector<2x8x32xf32>
    %183 = vector.shape_cast %182 : vector<2x8x32xf32> to vector<16x32xf32>
    %c0_93 = arith.constant 0 : index
    %c0_94 = arith.constant 0 : index
    %184 = vector.load %arg5[%c0_93, %c0_94] : memref<32x32xf32, #tpu.memory_space<vmem>>, vector<32x32xf32>
    %cst_95 = arith.constant dense<0.000000e+00> : vector<16x32xf32>
    %185 = tpu.matmul %183, %184, %cst_95 {dimension_numbers = #tpu.dot_dimension_numbers<[1], [0], [0], [1], [0, 0, 1, 1], [], []>} : vector<16x32xf32>, vector<32x32xf32>, vector<16x32xf32> -> vector<16x32xf32>
    %186 = vector.broadcast %6 : vector<1x32xf32> to vector<16x32xf32>
    %187 = arith.addf %185, %186 : vector<16x32xf32>
    %188 = arith.addf %96, %187 : vector<16x32xf32>
    %cst_96 = arith.constant dense<0.000000e+00> : vector<16xf32>
    %189 = vector.multi_reduction <add>, %188, %cst_96 [1] : vector<16x32xf32> to vector<16xf32>
    %190 = vector.shape_cast %189 : vector<16xf32> to vector<16x1xf32>
    %cst_97 = arith.constant 3.200000e+01 : f32
    %191 = vector.broadcast %cst_97 : f32 to vector<16x1xf32>
    %192 = arith.divf %190, %191 : vector<16x1xf32>
    %193 = vector.broadcast %192 : vector<16x1xf32> to vector<16x32xf32>
    %194 = arith.subf %188, %193 : vector<16x32xf32>
    %195 = arith.mulf %194, %194 : vector<16x32xf32>
    %cst_98 = arith.constant dense<0.000000e+00> : vector<16xf32>
    %196 = vector.multi_reduction <add>, %195, %cst_98 [1] : vector<16x32xf32> to vector<16xf32>
    %197 = vector.shape_cast %196 : vector<16xf32> to vector<16x1xf32>
    %cst_99 = arith.constant 3.200000e+01 : f32
    %198 = vector.broadcast %cst_99 : f32 to vector<16x1xf32>
    %199 = arith.divf %197, %198 : vector<16x1xf32>
    %200 = vector.broadcast %192 : vector<16x1xf32> to vector<16x32xf32>
    %201 = arith.subf %188, %200 : vector<16x32xf32>
    %cst_100 = arith.constant 9.99999974E-6 : f32
    %202 = vector.broadcast %cst_100 : f32 to vector<16x1xf32>
    %203 = arith.addf %199, %202 : vector<16x1xf32>
    %204 = math.rsqrt %203 : vector<16x1xf32>
    %205 = vector.broadcast %204 : vector<16x1xf32> to vector<16x32xf32>
    %206 = arith.mulf %201, %205 : vector<16x32xf32>
    %207 = vector.broadcast %7 : vector<1x32xf32> to vector<16x32xf32>
    %208 = arith.mulf %206, %207 : vector<16x32xf32>
    %209 = vector.broadcast %8 : vector<1x32xf32> to vector<16x32xf32>
    %210 = arith.addf %208, %209 : vector<16x32xf32>
    %c0_101 = arith.constant 0 : index
    %c0_102 = arith.constant 0 : index
    %211 = vector.load %arg6[%c0_101, %c0_102] : memref<32x128xf32, #tpu.memory_space<vmem>>, vector<32x128xf32>
    %cst_103 = arith.constant dense<0.000000e+00> : vector<16x128xf32>
    %212 = tpu.matmul %210, %211, %cst_103 {dimension_numbers = #tpu.dot_dimension_numbers<[1], [0], [0], [1], [0, 0, 1, 1], [], []>} : vector<16x32xf32>, vector<32x128xf32>, vector<16x128xf32> -> vector<16x128xf32>
    %213 = vector.broadcast %9 : vector<1x128xf32> to vector<16x128xf32>
    %214 = arith.addf %212, %213 : vector<16x128xf32>
    %215 = arith.mulf %214, %214 : vector<16x128xf32>
    %216 = arith.mulf %214, %215 : vector<16x128xf32>
    %cst_104 = arith.constant 4.471500e-02 : f32
    %217 = vector.broadcast %cst_104 : f32 to vector<16x128xf32>
    %218 = arith.mulf %217, %216 : vector<16x128xf32>
    %219 = arith.addf %214, %218 : vector<16x128xf32>
    %cst_105 = arith.constant 0.797884583 : f32
    %220 = vector.broadcast %cst_105 : f32 to vector<16x128xf32>
    %221 = arith.mulf %220, %219 : vector<16x128xf32>
    %222 = math.tanh %221 : vector<16x128xf32>
    %cst_106 = arith.constant 1.000000e+00 : f32
    %223 = vector.broadcast %cst_106 : f32 to vector<16x128xf32>
    %224 = arith.addf %223, %222 : vector<16x128xf32>
    %cst_107 = arith.constant 5.000000e-01 : f32
    %225 = vector.broadcast %cst_107 : f32 to vector<16x128xf32>
    %226 = arith.mulf %225, %224 : vector<16x128xf32>
    %227 = arith.mulf %214, %226 : vector<16x128xf32>
    %c0_108 = arith.constant 0 : index
    %c0_109 = arith.constant 0 : index
    %228 = vector.load %arg7[%c0_108, %c0_109] : memref<128x32xf32, #tpu.memory_space<vmem>>, vector<128x32xf32>
    %cst_110 = arith.constant dense<0.000000e+00> : vector<16x32xf32>
    %229 = tpu.matmul %227, %228, %cst_110 {dimension_numbers = #tpu.dot_dimension_numbers<[1], [0], [0], [1], [0, 0, 1, 1], [], []>} : vector<16x128xf32>, vector<128x32xf32>, vector<16x32xf32> -> vector<16x32xf32>
    %230 = vector.broadcast %10 : vector<1x32xf32> to vector<16x32xf32>
    %231 = arith.addf %229, %230 : vector<16x32xf32>
    %232 = arith.addf %188, %231 : vector<16x32xf32>
    %cst_111 = arith.constant dense<0.000000e+00> : vector<16xf32>
    %233 = vector.multi_reduction <add>, %232, %cst_111 [1] : vector<16x32xf32> to vector<16xf32>
    %234 = vector.shape_cast %233 : vector<16xf32> to vector<16x1xf32>
    %cst_112 = arith.constant 3.200000e+01 : f32
    %235 = vector.broadcast %cst_112 : f32 to vector<16x1xf32>
    %236 = arith.divf %234, %235 : vector<16x1xf32>
    %237 = vector.broadcast %236 : vector<16x1xf32> to vector<16x32xf32>
    %238 = arith.subf %232, %237 : vector<16x32xf32>
    %239 = arith.mulf %238, %238 : vector<16x32xf32>
    %cst_113 = arith.constant dense<0.000000e+00> : vector<16xf32>
    %240 = vector.multi_reduction <add>, %239, %cst_113 [1] : vector<16x32xf32> to vector<16xf32>
    %241 = vector.shape_cast %240 : vector<16xf32> to vector<16x1xf32>
    %cst_114 = arith.constant 3.200000e+01 : f32
    %242 = vector.broadcast %cst_114 : f32 to vector<16x1xf32>
    %243 = arith.divf %241, %242 : vector<16x1xf32>
    %244 = vector.broadcast %236 : vector<16x1xf32> to vector<16x32xf32>
    %245 = arith.subf %232, %244 : vector<16x32xf32>
    %cst_115 = arith.constant 9.99999974E-6 : f32
    %246 = vector.broadcast %cst_115 : f32 to vector<16x1xf32>
    %247 = arith.addf %243, %246 : vector<16x1xf32>
    %248 = math.rsqrt %247 : vector<16x1xf32>
    %249 = vector.broadcast %248 : vector<16x1xf32> to vector<16x32xf32>
    %250 = arith.mulf %245, %249 : vector<16x32xf32>
    %251 = vector.broadcast %11 : vector<1x32xf32> to vector<16x32xf32>
    %252 = arith.mulf %250, %251 : vector<16x32xf32>
    %253 = vector.broadcast %12 : vector<1x32xf32> to vector<16x32xf32>
    %254 = arith.addf %252, %253 : vector<16x32xf32>
    %c0_116 = arith.constant 0 : index
    %c0_117 = arith.constant 0 : index
    %255 = vector.load %arg8[%c0_116, %c0_117] : memref<32x128xf32, #tpu.memory_space<vmem>>, vector<32x128xf32>
    %cst_118 = arith.constant dense<0.000000e+00> : vector<16x128xf32>
    %256 = tpu.matmul %254, %255, %cst_118 {dimension_numbers = #tpu.dot_dimension_numbers<[1], [0], [0], [1], [0, 0, 1, 1], [], []>} : vector<16x32xf32>, vector<32x128xf32>, vector<16x128xf32> -> vector<16x128xf32>
    %257 = vector.broadcast %13 : vector<1x128xf32> to vector<16x128xf32>
    %258 = arith.addf %256, %257 : vector<16x128xf32>
    %c0_119 = arith.constant 0 : index
    %c0_120 = arith.constant 0 : index
    %259 = vector.load %arg10[%c0_119, %c0_120] : memref<16x128xf32, #tpu.memory_space<vmem>>, vector<16x128xf32>
    tpu.vector_store %arg10[%c0_119, %c0_120], %258 {strides = array<i32>} : memref<16x128xf32, #tpu.memory_space<vmem>>, vector<16x128xf32>,
    return
  }
  func.func @transform_0(%arg0: i32, %arg1: memref<16xi32, #tpu.memory_space<smem>>) -> (i32, i32, i32) {
    %c0_i32 = arith.constant 0 : i32
    %c0_i32_0 = arith.constant 0 : i32
    %c0_i32_1 = arith.constant 0 : i32
    %c0_i32_2 = arith.constant 0 : i32
    return %c0_i32, %c0_i32_0, %c0_i32_1 : i32, i32, i32
  }
  func.func @transform_1(%arg0: i32, %arg1: memref<16xi32, #tpu.memory_space<smem>>) -> (i32, i32) {
    %c0_i32 = arith.constant 0 : i32
    %c0_i32_0 = arith.constant 0 : i32
    %c0_i32_1 = arith.constant 0 : i32
    return %c0_i32, %c0_i32_0 : i32, i32
  }
  func.func @transform_2(%arg0: i32, %arg1: memref<16xi32, #tpu.memory_space<smem>>) -> (i32, i32, i32) {
    %c0_i32 = arith.constant 0 : i32
    %c0_i32_0 = arith.constant 0 : i32
    %c0_i32_1 = arith.constant 0 : i32
    %c0_i32_2 = arith.constant 0 : i32
    return %c0_i32, %c0_i32_0, %c0_i32_1 : i32, i32, i32
  }
  func.func @transform_3(%arg0: i32, %arg1: memref<16xi32, #tpu.memory_space<smem>>) -> (i32, i32) {
    %c0_i32 = arith.constant 0 : i32
    %c0_i32_0 = arith.constant 0 : i32
    %c0_i32_1 = arith.constant 0 : i32
    return %c0_i32, %c0_i32_0 : i32, i32
  }
  func.func @transform_4(%arg0: i32, %arg1: memref<16xi32, #tpu.memory_space<smem>>) -> (i32, i32) {
    %c0_i32 = arith.constant 0 : i32
    %c0_i32_0 = arith.constant 0 : i32
    %c0_i32_1 = arith.constant 0 : i32
    return %c0_i32, %c0_i32_0 : i32, i32
  }
  func.func @transform_5(%arg0: i32, %arg1: memref<16xi32, #tpu.memory_space<smem>>) -> (i32, i32) {
    %c0_i32 = arith.constant 0 : i32
    %c0_i32_0 = arith.constant 0 : i32
    %c0_i32_1 = arith.constant 0 : i32
    return %c0_i32, %c0_i32_0 : i32, i32
  }
  func.func @transform_6(%arg0: i32, %arg1: memref<16xi32, #tpu.memory_space<smem>>) -> (i32, i32) {
    %c0_i32 = arith.constant 0 : i32
    %c0_i32_0 = arith.constant 0 : i32
    %c0_i32_1 = arith.constant 0 : i32
    return %c0_i32, %c0_i32_0 : i32, i32
  }
  func.func @transform_7(%arg0: i32, %arg1: memref<16xi32, #tpu.memory_space<smem>>) -> (i32, i32) {
    %c0_i32 = arith.constant 0 : i32
    %c0_i32_0 = arith.constant 0 : i32
    %c0_i32_1 = arith.constant 0 : i32
    return %c0_i32, %c0_i32_0 : i32, i32
  }
  func.func @transform_8(%arg0: i32, %arg1: memref<16xi32, #tpu.memory_space<smem>>) -> (i32, i32) {
    %c0_i32 = arith.constant 0 : i32
    %c0_i32_0 = arith.constant 0 : i32
    %c0_i32_1 = arith.constant 0 : i32
    return %c0_i32, %c0_i32_0 : i32, i32
  }
}

</mosaic_0001>

<llo_original>
// kernel: transformer_lm_forward.1
$region0: #{transformer_lm_forward.1}
  #allocation0 [shape = 'u32[]', space=smem, size = 0x4, offset = 0x4, fixed_abs, tag = 'smem constant byte address 0x4 - core index']
  #allocation1 [shape = 'u32[144,128]{1,0:T(1,128)}', space=vmem, size = 0x12000, scoped, tag = 'internal scratch']
  #allocation2 [shape = 'f32[16,32]{1,0:T(8,128)}', space=vmem, size = 0x2000, scoped, tag = 'scratch operand']
  #allocation3 [shape = 's32[1]{0}', space=sflag, size = 0x4, scoped, tag = 'scoped memory for transformer_lm_forward.1']
  #allocation4 [shape = 'u8[512]{0}', space=smem, size = 0x200, scoped, tag = 'prefetched SMEM operand 0']
  %s0 = inlined_call_operand.vmem [shape: s32[16], index: 0, kind: input, shape index: {}]
  %s1 = inlined_call_operand.vmem [shape: f32[64,1,32], index: 1, kind: input, shape index: {}]
  %s2 = inlined_call_operand.vmem [shape: f32[16,32], index: 2, kind: input, shape index: {}]
  %s3 = inlined_call_operand.vmem [shape: f32[3,32,32], index: 3, kind: input, shape index: {}]
  %s4 = inlined_call_operand.vmem [shape: f32[32,32], index: 4, kind: input, shape index: {}]
  %s5 = inlined_call_operand.vmem [shape: f32[32,128], index: 5, kind: input, shape index: {}]
  %s6 = inlined_call_operand.vmem [shape: f32[128,32], index: 6, kind: input, shape index: {}]
  %s7 = inlined_call_operand.vmem [shape: f32[32,128], index: 7, kind: input, shape index: {}]
  %s8 = inlined_call_operand.vmem [shape: f32[13,128], index: 8, kind: input, shape index: {}]
  %s9 = inlined_call_operand.vmem [shape: f32[16,128], index: 9, kind: output, shape index: {}]
  %s10 = sld [smem:[#allocation0]]
  $region42: #{transformer_lm_forward.1} parent=0
    _
  %s12 = ssub.s32 1, %s10
  %s13 = scalar_select 0, %s12, %s10
  %s14 = sshll.u32 %s0, 4
  %s15 = int_to_ptr.vmem [resolvable:$true] %s14
  %17 = dma.vmem_to_smem %s15, 16, [#allocation4], [#allocation3]
  %18 = dma.done [#allocation3], 16
  %19 = sfence
  // Predicated region
  $region2: #{transformer_lm_forward.1} parent=0 // pred_check
    _
  $region3: #{transformer_lm_forward.1} parent=0 // pred_check_branch
    %21 = sbr.rel (0) target = $region5
  $region4: #{transformer_lm_forward.1} parent=0 // pred_region
    _
  $region5: #{transformer_lm_forward.1} parent=0 // pred_fallthru
    _
  // Predicated region
  $region6: #{transformer_lm_forward.1} parent=0 // pred_check
    _
  $region7: #{transformer_lm_forward.1} parent=0 // pred_check_branch
    %23 = sbr.rel (0) target = $region9
  $region8: #{transformer_lm_forward.1} parent=0 // pred_region
    _
  $region9: #{transformer_lm_forward.1} parent=0 // pred_fallthru
    _
  // Predicated region
  $region10: #{transformer_lm_forward.1} parent=0 // pred_check
    _
  $region11: #{transformer_lm_forward.1} parent=0 // pred_check_branch
    %25 = sbr.rel (0) target = $region13
  $region12: #{transformer_lm_forward.1} parent=0 // pred_region
    _
  $region13: #{transformer_lm_forward.1} parent=0 // pred_fallthru
    _
  // Predicated region
  $region14: #{transformer_lm_forward.1} parent=0 // pred_check
    _
  $region15: #{transformer_lm_forward.1} parent=0 // pred_check_branch
    %27 = sbr.rel (0) target = $region17
  $region16: #{transformer_lm_forward.1} parent=0 // pred_region
    _
  $region17: #{transformer_lm_forward.1} parent=0 // pred_fallthru
    _
  // Predicated region
  $region18: #{transformer_lm_forward.1} parent=0 // pred_check
    _
  $region19: #{transformer_lm_forward.1} parent=0 // pred_check_branch
    %29 = sbr.rel (0) target = $region21
  $region20: #{transformer_lm_forward.1} parent=0 // pred_region
    _
  $region21: #{transformer_lm_forward.1} parent=0 // pred_fallthru
    _
  // Predicated region
  $region22: #{transformer_lm_forward.1} parent=0 // pred_check
    _
  $region23: #{transformer_lm_forward.1} parent=0 // pred_check_branch
    %31 = sbr.rel (0) target = $region25
  $region24: #{transformer_lm_forward.1} parent=0 // pred_region
    _
  $region25: #{transformer_lm_forward.1} parent=0 // pred_fallthru
    _
  // Predicated region
  $region26: #{transformer_lm_forward.1} parent=0 // pred_check
    _
  $region27: #{transformer_lm_forward.1} parent=0 // pred_check_branch
    %33 = sbr.rel (0) target = $region29
  $region28: #{transformer_lm_forward.1} parent=0 // pred_region
    _
  $region29: #{transformer_lm_forward.1} parent=0 // pred_fallthru
    _
  // Predicated region
  $region30: #{transformer_lm_forward.1} parent=0 // pred_check
    _
  $region31: #{transformer_lm_forward.1} parent=0 // pred_check_branch
    %35 = sbr.rel (0) target = $region33
  $region32: #{transformer_lm_forward.1} parent=0 // pred_region
    _
  $region33: #{transformer_lm_forward.1} parent=0 // pred_fallthru
    _
  %v36 = vld [vmem:[%s8] sm:$0xff]
  %v37 = vld [vmem:[%s8 + $0x8] sm:$0x1f]
  %s38 = sld [smem:[#allocation4]]
  %s39 = scalar_lea.vmem %s1, %s38
  %v40 = vld [vmem:[%s39] sm:$0x1]
  %vm41 = vcmask 253952
  %42 = vst.msk [vmem:[#allocation2] sm:$0x1] %vm41, %v40
  %s43 = sld [smem:[#allocation4 + $0x1]]
  %s44 = scalar_lea.vmem %s1, %s43
  %v45 = vld [vmem:[%s44] sm:$0x1]
  %46 = vst.msk [vmem:[#allocation2 + $0x1] sm:$0x1] %vm41, %v45
  %s47 = sld [smem:[#allocation4 + $0x2]]
  %s48 = scalar_lea.vmem %s1, %s47
  %v49 = vld [vmem:[%s48] sm:$0x1]
  %50 = vst.msk [vmem:[#allocation2 + $0x2] sm:$0x1] %vm41, %v49
  %s51 = sld [smem:[#allocation4 + $0x3]]
  %s52 = scalar_lea.vmem %s1, %s51
  %v53 = vld [vmem:[%s52] sm:$0x1]
  %54 = vst.msk [vmem:[#allocation2 + $0x3] sm:$0x1] %vm41, %v53
  %s55 = sld [smem:[#allocation4 + $0x4]]
  %s56 = scalar_lea.vmem %s1, %s55
  %v57 = vld [vmem:[%s56] sm:$0x1]
  %58 = vst.msk [vmem:[#allocation2 + $0x4] sm:$0x1] %vm41, %v57
  %s59 = sld [smem:[#allocation4 + $0x5]]
  %s60 = scalar_lea.vmem %s1, %s59
  %v61 = vld [vmem:[%s60] sm:$0x1]
  %62 = vst.msk [vmem:[#allocation2 + $0x5] sm:$0x1] %vm41, %v61
  %s63 = sld [smem:[#allocation4 + $0x6]]
  %s64 = scalar_lea.vmem %s1, %s63
  %v65 = vld [vmem:[%s64] sm:$0x1]
  %66 = vst.msk [vmem:[#allocation2 + $0x6] sm:$0x1] %vm41, %v65
  %s67 = sld [smem:[#allocation4 + $0x7]]
  %s68 = scalar_lea.vmem %s1, %s67
  %v69 = vld [vmem:[%s68] sm:$0x1]
  %70 = vst.msk [vmem:[#allocation2 + $0x7] sm:$0x1] %vm41, %v69
  %s71 = sld [smem:[#allocation4 + $0x8]]
  %s72 = scalar_lea.vmem %s1, %s71
  %v73 = vld [vmem:[%s72] sm:$0x1]
  %74 = vst.msk [vmem:[#allocation2 + $0x8] sm:$0x1] %vm41, %v73
  %s75 = sld [smem:[#allocation4 + $0x9]]
  %s76 = scalar_lea.vmem %s1, %s75
  %v77 = vld [vmem:[%s76] sm:$0x1]
  %78 = vst.msk [vmem:[#allocation2 + $0x9] sm:$0x1] %vm41, %v77
  %s79 = sld [smem:[#allocation4 + $0xa]]
  %s80 = scalar_lea.vmem %s1, %s79
  %v81 = vld [vmem:[%s80] sm:$0x1]
  %82 = vst.msk [vmem:[#allocation2 + $0xa] sm:$0x1] %vm41, %v81
  %s83 = sld [smem:[#allocation4 + $0xb]]
  %s84 = scalar_lea.vmem %s1, %s83
  %v85 = vld [vmem:[%s84] sm:$0x1]
  %86 = vst.msk [vmem:[#allocation2 + $0xb] sm:$0x1] %vm41, %v85
  %s87 = sld [smem:[#allocation4 + $0xc]]
  %s88 = scalar_lea.vmem %s1, %s87
  %v89 = vld [vmem:[%s88] sm:$0x1]
  %90 = vst.msk [vmem:[#allocation2 + $0xc] sm:$0x1] %vm41, %v89
  %s91 = sld [smem:[#allocation4 + $0xd]]
  %s92 = scalar_lea.vmem %s1, %s91
  %v93 = vld [vmem:[%s92] sm:$0x1]
  %94 = vst.msk [vmem:[#allocation2 + $0xd] sm:$0x1] %vm41, %v93
  %s95 = sld [smem:[#allocation4 + $0xe]]
  %s96 = scalar_lea.vmem %s1, %s95
  %v97 = vld [vmem:[%s96] sm:$0x1]
  %98 = vst.msk [vmem:[#allocation2 + $0xe] sm:$0x1] %vm41, %v97
  %s99 = sld [smem:[#allocation4 + $0xf]]
  %s100 = scalar_lea.vmem %s1, %s99
  %v101 = vld [vmem:[%s100] sm:$0x1]
  %102 = vst.msk [vmem:[#allocation2 + $0xf] sm:$0x1] %vm41, %v101
  %v103 = vld [vmem:[#allocation2] sm:$0xff]
  %v104 = vld [vmem:[#allocation2 + $0x8] sm:$0xff]
  %v105 = vld [vmem:[%s2] sm:$0xff]
  %v106 = vld [vmem:[%s2 + $0x8] sm:$0xff]
  %v107 = vadd.f32 %v103, %v105
  %v108 = vadd.f32 %v104, %v106
  %vm109 = vcmask 261120
  %v110 = vsel %vm109, %v107, 0.0
  %111 = vadd.xlane.f32.xlu0 %v110
  %v112 = vpop.xlane.xlu0 %111
  %v113 = vsel %vm109, %v108, 0.0
  %114 = vadd.xlane.f32.xlu0 %v113
  %v115 = vpop.xlane.xlu0 %114
  %v116 = vrcp.pop 32.0
  %v117 = vmul.f32 %v112, %v116
  %v118 = vmul.f32 %v115, %v116
  %v119 = vsub.f32 %v107, %v117
  %v120 = vsub.f32 %v108, %v118
  %v121 = vmul.f32 %v119, %v119
  %v122 = vmul.f32 %v120, %v120
  %v123 = vsel %vm109, %v121, 0.0
  %124 = vadd.xlane.f32.xlu0 %v123
  %v125 = vpop.xlane.xlu0 %124
  %v126 = vsel %vm109, %v122, 0.0
  %127 = vadd.xlane.f32.xlu0 %v126
  %v128 = vpop.xlane.xlu0 %127
  %v129 = vmul.f32 %v125, %v116
  %v130 = vmul.f32 %v128, %v116
  %v131 = vadd.f32 %v129, 1e-05
  %v132 = vadd.f32 %v130, 1e-05
  %v133 = vrsqrt.pop %v131
  %v134 = vrsqrt.pop %v132
  %v135 = vmul.f32 %v119, %v133
  %v136 = vmul.f32 %v120, %v134
  %v137 = vlaneseq
  %v138 = vshrl.u32 %v137, 7
  %v139 = vsub.s32 0, %v138
  %v140 = vrot.slane %v36, %v139
  %v141 = vmul.f32 %v135, %v140
  %v142 = vmul.f32 %v136, %v140
  %v143 = vlaneseq
  %v144 = vshrl.u32 %v143, 7
  %v145 = vsub.s32 1, %v144
  %v146 = vrot.slane %v36, %v145
  %v147 = vadd.f32 %v141, %v146
  %v148 = vadd.f32 %v142, %v146
  %v149 = vld [vmem:[%s3] sm:$0xff]
  %v150 = vld [vmem:[%s3 + $0x8] sm:$0xff]
  %v151 = vld [vmem:[%s3 + $0x10] sm:$0xff]
  %v152 = vld [vmem:[%s3 + $0x18] sm:$0xff]
  %v153 = vlaneseq
  %v154 = vshrl.u32 %v153, 7
  %v155 = vsub.s32 2, %v154
  %v156 = vrot.slane %v36, %v155
  %v158 = vsel %vm109, %v147, 0
  %v161 = vsel %vm109, %v148, 0
  %163 = vmatprep.subr.mxu0 0.0
  %164 = vmatpush1.msra.mxu0 %v149
  %165 = vmatprep.subr.mxu0 0.0
  %166 = vmatpush1.msra.mxu0 %v150
  %167 = vmatprep.subr.mxu0 0.0
  %168 = vmatpush1.msra.mxu0 %v151
  %169 = vmatprep.subr.mxu0 0.0
  %170 = vmatpush1.msra.mxu0 %v152
  %171 = vmatprep.subr.mxu0 0.0
  %172 = vmatpush1.msra.mxu0 0.0
  %173 = vmatprep.subr.mxu0 0.0
  %174 = vmatpush1.msra.mxu0 0.0
  %175 = vmatprep.subr.mxu0 0.0
  %176 = vmatpush1.msra.mxu0 0.0
  %177 = vmatprep.subr.mxu0 0.0
  %178 = vmatpush1.msra.mxu0 0.0
  %179 = vmatprep.subr.mxu0 0.0
  %180 = vmatpush1.msra.mxu0 0.0
  %181 = vmatprep.subr.mxu0 0.0
  %182 = vmatpush1.msra.mxu0 0.0
  %183 = vmatprep.subr.mxu0 0.0
  %184 = vmatpush1.msra.mxu0 0.0
  %185 = vmatprep.subr.mxu0 0.0
  %186 = vmatpush1.msra.mxu0 0.0
  %187 = vmatprep.subr.mxu0 0.0
  %188 = vmatpush1.msra.mxu0 0.0
  %189 = vmatprep.subr.mxu0 0.0
  %190 = vmatpush1.msra.mxu0 0.0
  %191 = vmatprep.subr.mxu0 0.0
  %192 = vmatpush1.msra.mxu0 0.0
  %193 = vmatprep.subr.mxu0 0.0
  %194 = vmatpush1.msra.mxu0 0.0
  %195 = vmatprep.subr.mxu0 0.0
  %196 = vmatpush1.msra.mxu0 0.0
  %197 = vmatprep.subr.mxu0 0.0
  %198 = vmatpush1.msra.mxu0 0.0
  %199 = vmatprep.subr.mxu0 0.0
  %200 = vmatpush1.msra.mxu0 0.0
  %201 = vmatprep.subr.mxu0 0.0
  %202 = vmatpush1.msra.mxu0 0.0
  %203 = vmatprep.subr.mxu0 0.0
  %204 = vmatpush1.msra.mxu0 0.0
  %205 = vmatprep.subr.mxu0 0.0
  %206 = vmatpush1.msra.mxu0 0.0
  %207 = vmatprep.subr.mxu0 0.0
  %208 = vmatpush1.msra.mxu0 0.0
  %209 = vmatprep.subr.mxu0 0.0
  %210 = vmatpush1.msra.mxu0 0.0
  %211 = vmatprep.subr.mxu0 0.0
  %212 = vmatpush1.msra.mxu0 0.0
  %213 = vmatprep.subr.mxu0 0.0
  %214 = vmatpush1.msra.mxu0 0.0
  %215 = vmatprep.subr.mxu0 0.0
  %216 = vmatpush1.msra.mxu0 0.0
  %217 = vmatprep.subr.mxu0 0.0
  %218 = vmatpush1.msra.mxu0 0.0
  %219 = vmatprep.subr.mxu0 0.0
  %220 = vmatpush1.msra.mxu0 0.0
  %221 = vmatprep.subr.mxu0 0.0
  %222 = vmatpush1.msra.mxu0 0.0
  %223 = vmatprep.subr.mxu0 0.0
  %224 = vmatpush1.msra.mxu0 0.0
  %225 = vmatprep.subr.mxu0 0.0
  %226 = vmatpush1.msra.mxu0 0.0
  %227 = vmatprep.mubr.f32.mxu0 0.0
  %228 = vmatmul.mubr.f32.gmra.mrb[0].mxu0 %v158
  %v229 = vpop.f32.mrb[0].mxu0
  %v230 = vadd.f32 %v156, %v229
  %v231 = vpop.f32.mrb[0].mxu0
  %232 = vmatprep.mubr.f32.mxu0 0.0
  %233 = vmatmul.mubr.f32.gmra.mrb[0].mxu0 %v161
  %v234 = vpop.f32.mrb[0].mxu0
  %v235 = vadd.f32 %v156, %v234
  %v236 = vpop.f32.mrb[0].mxu0
  %237 = vdwg.mxu0
  %s238 = scalar_lea.vmem %s3, 32
  %v239 = vld [vmem:[%s238] sm:$0xff]
  %v240 = vld [vmem:[%s238 + $0x8] sm:$0xff]
  %v241 = vld [vmem:[%s238 + $0x10] sm:$0xff]
  %v242 = vld [vmem:[%s238 + $0x18] sm:$0xff]
  %v243 = vlaneseq
  %v244 = vshrl.u32 %v243, 7
  %v245 = vsub.s32 3, %v244
  %v246 = vrot.slane %v36, %v245
  %247 = vmatprep.subr.mxu0 0.0
  %248 = vmatpush1.msra.mxu0 %v239
  %249 = vmatprep.subr.mxu0 0.0
  %250 = vmatpush1.msra.mxu0 %v240
  %251 = vmatprep.subr.mxu0 0.0
  %252 = vmatpush1.msra.mxu0 %v241
  %253 = vmatprep.subr.mxu0 0.0
  %254 = vmatpush1.msra.mxu0 %v242
  %255 = vmatprep.subr.mxu0 0.0
  %256 = vmatpush1.msra.mxu0 0.0
  %257 = vmatprep.subr.mxu0 0.0
  %258 = vmatpush1.msra.mxu0 0.0
  %259 = vmatprep.subr.mxu0 0.0
  %260 = vmatpush1.msra.mxu0 0.0
  %261 = vmatprep.subr.mxu0 0.0
  %262 = vmatpush1.msra.mxu0 0.0
  %263 = vmatprep.subr.mxu0 0.0
  %264 = vmatpush1.msra.mxu0 0.0
  %265 = vmatprep.subr.mxu0 0.0
  %266 = vmatpush1.msra.mxu0 0.0
  %267 = vmatprep.subr.mxu0 0.0
  %268 = vmatpush1.msra.mxu0 0.0
  %269 = vmatprep.subr.mxu0 0.0
  %270 = vmatpush1.msra.mxu0 0.0
  %271 = vmatprep.subr.mxu0 0.0
  %272 = vmatpush1.msra.mxu0 0.0
  %273 = vmatprep.subr.mxu0 0.0
  %274 = vmatpush1.msra.mxu0 0.0
  %275 = vmatprep.subr.mxu0 0.0
  %276 = vmatpush1.msra.mxu0 0.0
  %277 = vmatprep.subr.mxu0 0.0
  %278 = vmatpush1.msra.mxu0 0.0
  %279 = vmatprep.subr.mxu0 0.0
  %280 = vmatpush1.msra.mxu0 0.0
  %281 = vmatprep.subr.mxu0 0.0
  %282 = vmatpush1.msra.mxu0 0.0
  %283 = vmatprep.subr.mxu0 0.0
  %284 = vmatpush1.msra.mxu0 0.0
  %285 = vmatprep.subr.mxu0 0.0
  %286 = vmatpush1.msra.mxu0 0.0
  %287 = vmatprep.subr.mxu0 0.0
  %288 = vmatpush1.msra.mxu0 0.0
  %289 = vmatprep.subr.mxu0 0.0
  %290 = vmatpush1.msra.mxu0 0.0
  %291 = vmatprep.subr.mxu0 0.0
  %292 = vmatpush1.msra.mxu0 0.0
  %293 = vmatprep.subr.mxu0 0.0
  %294 = vmatpush1.msra.mxu0 0.0
  %295 = vmatprep.subr.mxu0 0.0
  %296 = vmatpush1.msra.mxu0 0.0
  %297 = vmatprep.subr.mxu0 0.0
  %298 = vmatpush1.msra.mxu0 0.0
  %299 = vmatprep.subr.mxu0 0.0
  %300 = vmatpush1.msra.mxu0 0.0
  %301 = vmatprep.subr.mxu0 0.0
  %302 = vmatpush1.msra.mxu0 0.0
  %303 = vmatprep.subr.mxu0 0.0
  %304 = vmatpush1.msra.mxu0 0.0
  %305 = vmatprep.subr.mxu0 0.0
  %306 = vmatpush1.msra.mxu0 0.0
  %307 = vmatprep.subr.mxu0 0.0
  %308 = vmatpush1.msra.mxu0 0.0
  %309 = vmatprep.subr.mxu0 0.0
  %310 = vmatpush1.msra.mxu0 0.0
  %311 = vmatprep.mubr.f32.mxu0 0.0
  %312 = vmatmul.mubr.f32.gmra.mrb[0].mxu0 %v158
  %v313 = vpop.f32.mrb[0].mxu0
  %v314 = vadd.f32 %v246, %v313
  %v315 = vpop.f32.mrb[0].mxu0
  %316 = vmatprep.mubr.f32.mxu0 0.0
  %317 = vmatmul.mubr.f32.gmra.mrb[0].mxu0 %v161
  %v318 = vpop.f32.mrb[0].mxu0
  %v319 = vadd.f32 %v246, %v318
  %v320 = vpop.f32.mrb[0].mxu0
  %321 = vdwg.mxu0
  %s322 = scalar_lea.vmem %s3, 64
  %v323 = vld [vmem:[%s322] sm:$0xff]
  %v324 = vld [vmem:[%s322 + $0x8] sm:$0xff]
  %v325 = vld [vmem:[%s322 + $0x10] sm:$0xff]
  %v326 = vld [vmem:[%s322 + $0x18] sm:$0xff]
  %v327 = vlaneseq
  %v328 = vshrl.u32 %v327, 7
  %v329 = vsub.s32 4, %v328
  %v330 = vrot.slane %v36, %v329
  %331 = vmatprep.subr.mxu0 0.0
  %332 = vmatpush1.msra.mxu0 %v323
  %333 = vmatprep.subr.mxu0 0.0
  %334 = vmatpush1.msra.mxu0 %v324
  %335 = vmatprep.subr.mxu0 0.0
  %336 = vmatpush1.msra.mxu0 %v325
  %337 = vmatprep.subr.mxu0 0.0
  %338 = vmatpush1.msra.mxu0 %v326
  %339 = vmatprep.subr.mxu0 0.0
  %340 = vmatpush1.msra.mxu0 0.0
  %341 = vmatprep.subr.mxu0 0.0
  %342 = vmatpush1.msra.mxu0 0.0
  %343 = vmatprep.subr.mxu0 0.0
  %344 = vmatpush1.msra.mxu0 0.0
  %345 = vmatprep.subr.mxu0 0.0
  %346 = vmatpush1.msra.mxu0 0.0
  %347 = vmatprep.subr.mxu0 0.0
  %348 = vmatpush1.msra.mxu0 0.0
  %349 = vmatprep.subr.mxu0 0.0
  %350 = vmatpush1.msra.mxu0 0.0
  %351 = vmatprep.subr.mxu0 0.0
  %352 = vmatpush1.msra.mxu0 0.0
  %353 = vmatprep.subr.mxu0 0.0
  %354 = vmatpush1.msra.mxu0 0.0
  %355 = vmatprep.subr.mxu0 0.0
  %356 = vmatpush1.msra.mxu0 0.0
  %357 = vmatprep.subr.mxu0 0.0
  %358 = vmatpush1.msra.mxu0 0.0
  %359 = vmatprep.subr.mxu0 0.0
  %360 = vmatpush1.msra.mxu0 0.0
  %361 = vmatprep.subr.mxu0 0.0
  %362 = vmatpush1.msra.mxu0 0.0
  %363 = vmatprep.subr.mxu0 0.0
  %364 = vmatpush1.msra.mxu0 0.0
  %365 = vmatprep.subr.mxu0 0.0
  %366 = vmatpush1.msra.mxu0 0.0
  %367 = vmatprep.subr.mxu0 0.0
  %368 = vmatpush1.msra.mxu0 0.0
  %369 = vmatprep.subr.mxu0 0.0
  %370 = vmatpush1.msra.mxu0 0.0
  %371 = vmatprep.subr.mxu0 0.0
  %372 = vmatpush1.msra.mxu0 0.0
  %373 = vmatprep.subr.mxu0 0.0
  %374 = vmatpush1.msra.mxu0 0.0
  %375 = vmatprep.subr.mxu0 0.0
  %376 = vmatpush1.msra.mxu0 0.0
  %377 = vmatprep.subr.mxu0 0.0
  %378 = vmatpush1.msra.mxu0 0.0
  %379 = vmatprep.subr.mxu0 0.0
  %380 = vmatpush1.msra.mxu0 0.0
  %381 = vmatprep.subr.mxu0 0.0
  %382 = vmatpush1.msra.mxu0 0.0
  %383 = vmatprep.subr.mxu0 0.0
  %384 = vmatpush1.msra.mxu0 0.0
  %385 = vmatprep.subr.mxu0 0.0
  %386 = vmatpush1.msra.mxu0 0.0
  %387 = vmatprep.subr.mxu0 0.0
  %388 = vmatpush1.msra.mxu0 0.0
  %389 = vmatprep.subr.mxu0 0.0
  %390 = vmatpush1.msra.mxu0 0.0
  %391 = vmatprep.subr.mxu0 0.0
  %392 = vmatpush1.msra.mxu0 0.0
  %393 = vmatprep.subr.mxu0 0.0
  %394 = vmatpush1.msra.mxu0 0.0
  %395 = vmatprep.mubr.f32.mxu0 0.0
  %396 = vmatmul.mubr.f32.gmra.mrb[0].mxu0 %v158
  %v397 = vpop.f32.mrb[0].mxu0
  %v398 = vadd.f32 %v330, %v397
  %v399 = vpop.f32.mrb[0].mxu0
  %400 = vmatprep.mubr.f32.mxu0 0.0
  %401 = vmatmul.mubr.f32.gmra.mrb[0].mxu0 %v161
  %v402 = vpop.f32.mrb[0].mxu0
  %v403 = vadd.f32 %v330, %v402
  %v404 = vpop.f32.mrb[0].mxu0
  %405 = vdwg.mxu0
  %v406 = vlaneseq
  %v407 = vshrl.u32 %v406, 7
  %v408 = vadd.s32 %v407, 8
  %v409 = vadd.s32 %v407, 16
  %v410 = vadd.s32 %v407, 24
  %v411 = vlaneseq
  %v412 = vand.u32 %v411, 127
  %v413 = vshra.s32 %v407, 3
  %v414 = vshra.s32 %v408, 3
  %v415 = vshra.s32 %v409, 3
  %v416 = vshra.s32 %v410, 3
  %vm417 = vcmp.eq.s32.totalorder %v413, %v412
  %vm418 = vcmp.eq.s32.totalorder %v414, %v412
  %vm419 = vcmp.eq.s32.totalorder %v415, %v412
  %vm420 = vcmp.eq.s32.totalorder %v416, %v412
  %v421 = vsel %vm417, 1, 0
  %v422 = vsel %vm418, 1, 0
  %v423 = vsel %vm419, 1, 0
  %v424 = vsel %vm420, 1, 0
  %v425 = vcvt.s32.f32 %v421
  %v426 = vcvt.s32.f32 %v422
  %v427 = vcvt.s32.f32 %v423
  %v428 = vcvt.s32.f32 %v424
  %v429 = vshra.s32 %v412, 3
  %vm430 = vcmp.eq.s32.totalorder %v429, %v407
  %v431 = vsel %vm430, 1, 0
  %v432 = vcvt.s32.f32 %v431
  %v435 = vcombine.high %v230, %v230
  %v437 = vunpack.c.l.s4 1966171168
  %v438 = vunpack.c.0.s8 %v437
  %v439 = vlaneseq
  %v440 = vshrl.u32 %v439, 7
  %v441 = vsub.s32 %v438, %v440
  %v442 = vrot.slane %v230, %v441
  %v444 = vunpack.c.l.s4 1966171168
  %v445 = vunpack.c.0.s8 %v444
  %v446 = vlaneseq
  %v447 = vshrl.u32 %v446, 7
  %v448 = vsub.s32 %v445, %v447
  %v449 = vrot.slane %v435, %v448
  %v450 = vcombine.high %v442, %v442
  %v451 = vcombine.high %v449, %v449
  %v453 = vunpack.c.l.s4 1966171168
  %v454 = vunpack.c.0.s8 %v453
  %v455 = vlaneseq
  %v456 = vshrl.u32 %v455, 7
  %v457 = vsub.s32 %v454, %v456
  %v458 = vrot.slane %v442, %v457
  %v460 = vunpack.c.l.s4 1966171168
  %v461 = vunpack.c.0.s8 %v460
  %v462 = vlaneseq
  %v463 = vshrl.u32 %v462, 7
  %v464 = vsub.s32 %v461, %v463
  %v465 = vrot.slane %v449, %v464
  %v467 = vunpack.c.l.s4 1966171168
  %v468 = vunpack.c.0.s8 %v467
  %v469 = vlaneseq
  %v470 = vshrl.u32 %v469, 7
  %v471 = vsub.s32 %v468, %v470
  %v472 = vrot.slane %v450, %v471
  %v474 = vunpack.c.l.s4 1966171168
  %v475 = vunpack.c.0.s8 %v474
  %v476 = vlaneseq
  %v477 = vshrl.u32 %v476, 7
  %v478 = vsub.s32 %v475, %v477
  %v479 = vrot.slane %v451, %v478
  %v480 = vcombine.high %v458, %v458
  %v481 = vcombine.high %v465, %v465
  %v482 = vcombine.high %v472, %v472
  %v483 = vcombine.high %v479, %v479
  %v484 = vcombine.high %v235, %v235
  %v486 = vunpack.c.l.s4 1966171168
  %v487 = vunpack.c.0.s8 %v486
  %v488 = vlaneseq
  %v489 = vshrl.u32 %v488, 7
  %v490 = vsub.s32 %v487, %v489
  %v491 = vrot.slane %v235, %v490
  %v493 = vunpack.c.l.s4 1966171168
  %v494 = vunpack.c.0.s8 %v493
  %v495 = vlaneseq
  %v496 = vshrl.u32 %v495, 7
  %v497 = vsub.s32 %v494, %v496
  %v498 = vrot.slane %v484, %v497
  %v499 = vcombine.high %v491, %v491
  %v500 = vcombine.high %v498, %v498
  %v502 = vunpack.c.l.s4 1966171168
  %v503 = vunpack.c.0.s8 %v502
  %v504 = vlaneseq
  %v505 = vshrl.u32 %v504, 7
  %v506 = vsub.s32 %v503, %v505
  %v507 = vrot.slane %v491, %v506
  %v509 = vunpack.c.l.s4 1966171168
  %v510 = vunpack.c.0.s8 %v509
  %v511 = vlaneseq
  %v512 = vshrl.u32 %v511, 7
  %v513 = vsub.s32 %v510, %v512
  %v514 = vrot.slane %v498, %v513
  %v516 = vunpack.c.l.s4 1966171168
  %v517 = vunpack.c.0.s8 %v516
  %v518 = vlaneseq
  %v519 = vshrl.u32 %v518, 7
  %v520 = vsub.s32 %v517, %v519
  %v521 = vrot.slane %v499, %v520
  %v523 = vunpack.c.l.s4 1966171168
  %v524 = vunpack.c.0.s8 %v523
  %v525 = vlaneseq
  %v526 = vshrl.u32 %v525, 7
  %v527 = vsub.s32 %v524, %v526
  %v528 = vrot.slane %v500, %v527
  %v529 = vcombine.high %v507, %v507
  %v530 = vcombine.high %v514, %v514
  %v531 = vcombine.high %v521, %v521
  %v532 = vcombine.high %v528, %v528
  %v533 = vlaneseq
  %v534 = vshrl.u32 %v533, 7
  %v535 = vsub.s32 0, %v534
  %v536 = vrot.slane %v458, %v535
  %v537 = vlaneseq
  %v538 = vshrl.u32 %v537, 7
  %v539 = vsub.s32 0, %v538
  %v540 = vrot.slane %v472, %v539
  %v541 = vlaneseq
  %v542 = vshrl.u32 %v541, 7
  %v543 = vsub.s32 0, %v542
  %v544 = vrot.slane %v480, %v543
  %v545 = vlaneseq
  %v546 = vshrl.u32 %v545, 7
  %v547 = vsub.s32 0, %v546
  %v548 = vrot.slane %v482, %v547
  %v549 = vlaneseq
  %v550 = vshrl.u32 %v549, 7
  %v551 = vsub.s32 0, %v550
  %v552 = vrot.slane %v465, %v551
  %v553 = vlaneseq
  %v554 = vshrl.u32 %v553, 7
  %v555 = vsub.s32 0, %v554
  %v556 = vrot.slane %v479, %v555
  %v557 = vlaneseq
  %v558 = vshrl.u32 %v557, 7
  %v559 = vsub.s32 0, %v558
  %v560 = vrot.slane %v481, %v559
  %v561 = vlaneseq
  %v562 = vshrl.u32 %v561, 7
  %v563 = vsub.s32 0, %v562
  %v564 = vrot.slane %v483, %v563
  %v565 = vlaneseq
  %v566 = vshrl.u32 %v565, 7
  %v567 = vsub.s32 0, %v566
  %v568 = vrot.slane %v507, %v567
  %v569 = vlaneseq
  %v570 = vshrl.u32 %v569, 7
  %v571 = vsub.s32 0, %v570
  %v572 = vrot.slane %v521, %v571
  %v573 = vlaneseq
  %v574 = vshrl.u32 %v573, 7
  %v575 = vsub.s32 0, %v574
  %v576 = vrot.slane %v529, %v575
  %v577 = vlaneseq
  %v578 = vshrl.u32 %v577, 7
  %v579 = vsub.s32 0, %v578
  %v580 = vrot.slane %v531, %v579
  %v581 = vlaneseq
  %v582 = vshrl.u32 %v581, 7
  %v583 = vsub.s32 0, %v582
  %v584 = vrot.slane %v514, %v583
  %v585 = vlaneseq
  %v586 = vshrl.u32 %v585, 7
  %v587 = vsub.s32 0, %v586
  %v588 = vrot.slane %v528, %v587
  %v589 = vlaneseq
  %v590 = vshrl.u32 %v589, 7
  %v591 = vsub.s32 0, %v590
  %v592 = vrot.slane %v530, %v591
  %v593 = vlaneseq
  %v594 = vshrl.u32 %v593, 7
  %v595 = vsub.s32 0, %v594
  %v596 = vrot.slane %v532, %v595
  %v613 = vmul.f32 %v536, %v314
  %v614 = vmul.f32 %v540, %v314
  %v615 = vmul.f32 %v544, %v314
  %v616 = vmul.f32 %v548, %v314
  %v617 = vmul.f32 %v552, %v314
  %v618 = vmul.f32 %v556, %v314
  %v619 = vmul.f32 %v560, %v314
  %v620 = vmul.f32 %v564, %v314
  %v621 = vmul.f32 %v568, %v319
  %v622 = vmul.f32 %v572, %v319
  %v623 = vmul.f32 %v576, %v319
  %v624 = vmul.f32 %v580, %v319
  %v625 = vmul.f32 %v584, %v319
  %v626 = vmul.f32 %v588, %v319
  %v627 = vmul.f32 %v592, %v319
  %v628 = vmul.f32 %v596, %v319
  %v630 = vsel %vm109, %v613, 0
  %v633 = vsel %vm109, %v614, 0
  %v636 = vsel %vm109, %v615, 0
  %v639 = vsel %vm109, %v616, 0
  %v642 = vsel %vm109, %v617, 0
  %v645 = vsel %vm109, %v618, 0
  %v648 = vsel %vm109, %v619, 0
  %v651 = vsel %vm109, %v620, 0
  %v654 = vsel %vm109, %v621, 0
  %v657 = vsel %vm109, %v622, 0
  %v660 = vsel %vm109, %v623, 0
  %v663 = vsel %vm109, %v624, 0
  %v666 = vsel %vm109, %v625, 0
  %v669 = vsel %vm109, %v626, 0
  %v672 = vsel %vm109, %v627, 0
  %v675 = vsel %vm109, %v628, 0
  %677 = vmatprep.subr.mxu0 0.0
  %678 = vmatpush1.msra.mxu0 %v425
  %679 = vmatprep.subr.mxu0 0.0
  %680 = vmatpush1.msra.mxu0 %v426
  %681 = vmatprep.subr.mxu0 0.0
  %682 = vmatpush1.msra.mxu0 %v427
  %683 = vmatprep.subr.mxu0 0.0
  %684 = vmatpush1.msra.mxu0 %v428
  %685 = vmatprep.subr.mxu0 0.0
  %686 = vmatpush1.msra.mxu0 0.0
  %687 = vmatprep.subr.mxu0 0.0
  %688 = vmatpush1.msra.mxu0 0.0
  %689 = vmatprep.subr.mxu0 0.0
  %690 = vmatpush1.msra.mxu0 0.0
  %691 = vmatprep.subr.mxu0 0.0
  %692 = vmatpush1.msra.mxu0 0.0
  %693 = vmatprep.subr.mxu0 0.0
  %694 = vmatpush1.msra.mxu0 0.0
  %695 = vmatprep.subr.mxu0 0.0
  %696 = vmatpush1.msra.mxu0 0.0
  %697 = vmatprep.subr.mxu0 0.0
  %698 = vmatpush1.msra.mxu0 0.0
  %699 = vmatprep.subr.mxu0 0.0
  %700 = vmatpush1.msra.mxu0 0.0
  %701 = vmatprep.subr.mxu0 0.0
  %702 = vmatpush1.msra.mxu0 0.0
  %703 = vmatprep.subr.mxu0 0.0
  %704 = vmatpush1.msra.mxu0 0.0
  %705 = vmatprep.subr.mxu0 0.0
  %706 = vmatpush1.msra.mxu0 0.0
  %707 = vmatprep.subr.mxu0 0.0
  %708 = vmatpush1.msra.mxu0 0.0
  %709 = vmatprep.subr.mxu0 0.0
  %710 = vmatpush1.msra.mxu0 0.0
  %711 = vmatprep.subr.mxu0 0.0
  %712 = vmatpush1.msra.mxu0 0.0
  %713 = vmatprep.subr.mxu0 0.0
  %714 = vmatpush1.msra.mxu0 0.0
  %715 = vmatprep.subr.mxu0 0.0
  %716 = vmatpush1.msra.mxu0 0.0
  %717 = vmatprep.subr.mxu0 0.0
  %718 = vmatpush1.msra.mxu0 0.0
  %719 = vmatprep.subr.mxu0 0.0
  %720 = vmatpush1.msra.mxu0 0.0
  %721 = vmatprep.subr.mxu0 0.0
  %722 = vmatpush1.msra.mxu0 0.0
  %723 = vmatprep.subr.mxu0 0.0
  %724 = vmatpush1.msra.mxu0 0.0
  %725 = vmatprep.subr.mxu0 0.0
  %726 = vmatpush1.msra.mxu0 0.0
  %727 = vmatprep.subr.mxu0 0.0
  %728 = vmatpush1.msra.mxu0 0.0
  %729 = vmatprep.subr.mxu0 0.0
  %730 = vmatpush1.msra.mxu0 0.0
  %731 = vmatprep.subr.mxu0 0.0
  %732 = vmatpush1.msra.mxu0 0.0
  %733 = vmatprep.subr.mxu0 0.0
  %734 = vmatpush1.msra.mxu0 0.0
  %735 = vmatprep.subr.mxu0 0.0
  %736 = vmatpush1.msra.mxu0 0.0
  %737 = vmatprep.subr.mxu0 0.0
  %738 = vmatpush1.msra.mxu0 0.0
  %739 = vmatprep.subr.mxu0 0.0
  %740 = vmatpush1.msra.mxu0 0.0
  %741 = vmatprep.mubr.f32.mxu0 0.0
  %742 = vmatmul.mubr.f32.gmra.mrb[0].mxu0 %v630
  %v743 = vpop.f32.mrb[0].mxu0
  %v744 = vadd.f32 0.0, %v743
  %v745 = vpop.f32.mrb[0].mxu0
  %746 = vmatprep.mubr.f32.mxu0 0.0
  %747 = vmatmul.mubr.f32.gmra.mrb[0].mxu0 %v633
  %v748 = vpop.f32.mrb[0].mxu0
  %v749 = vadd.f32 0.0, %v748
  %v750 = vpop.f32.mrb[0].mxu0
  %751 = vmatprep.mubr.f32.mxu0 0.0
  %752 = vmatmul.mubr.f32.gmra.mrb[0].mxu0 %v636
  %v753 = vpop.f32.mrb[0].mxu0
  %v754 = vadd.f32 0.0, %v753
  %v755 = vpop.f32.mrb[0].mxu0
  %756 = vmatprep.mubr.f32.mxu0 0.0
  %757 = vmatmul.mubr.f32.gmra.mrb[0].mxu0 %v639
  %v758 = vpop.f32.mrb[0].mxu0
  %v759 = vadd.f32 0.0, %v758
  %v760 = vpop.f32.mrb[0].mxu0
  %761 = vmatprep.mubr.f32.mxu0 0.0
  %762 = vmatmul.mubr.f32.gmra.mrb[0].mxu0 %v642
  %v763 = vpop.f32.mrb[0].mxu0
  %v764 = vadd.f32 0.0, %v763
  %v765 = vpop.f32.mrb[0].mxu0
  %766 = vmatprep.mubr.f32.mxu0 0.0
  %767 = vmatmul.mubr.f32.gmra.mrb[0].mxu0 %v645
  %v768 = vpop.f32.mrb[0].mxu0
  %v769 = vadd.f32 0.0, %v768
  %v770 = vpop.f32.mrb[0].mxu0
  %771 = vmatprep.mubr.f32.mxu0 0.0
  %772 = vmatmul.mubr.f32.gmra.mrb[0].mxu0 %v648
  %v773 = vpop.f32.mrb[0].mxu0
  %v774 = vadd.f32 0.0, %v773
  %v775 = vpop.f32.mrb[0].mxu0
  %776 = vmatprep.mubr.f32.mxu0 0.0
  %777 = vmatmul.mubr.f32.gmra.mrb[0].mxu0 %v651
  %v778 = vpop.f32.mrb[0].mxu0
  %v779 = vadd.f32 0.0, %v778
  %v780 = vpop.f32.mrb[0].mxu0
  %781 = vmatprep.mubr.f32.mxu0 0.0
  %782 = vmatmul.mubr.f32.gmra.mrb[0].mxu0 %v654
  %v783 = vpop.f32.mrb[0].mxu0
  %v784 = vadd.f32 0.0, %v783
  %v785 = vpop.f32.mrb[0].mxu0
  %786 = vmatprep.mubr.f32.mxu0 0.0
  %787 = vmatmul.mubr.f32.gmra.mrb[0].mxu0 %v657
  %v788 = vpop.f32.mrb[0].mxu0
  %v789 = vadd.f32 0.0, %v788
  %v790 = vpop.f32.mrb[0].mxu0
  %791 = vmatprep.mubr.f32.mxu0 0.0
  %792 = vmatmul.mubr.f32.gmra.mrb[0].mxu0 %v660
  %v793 = vpop.f32.mrb[0].mxu0
  %v794 = vadd.f32 0.0, %v793
  %v795 = vpop.f32.mrb[0].mxu0
  %796 = vmatprep.mubr.f32.mxu0 0.0
  %797 = vmatmul.mubr.f32.gmra.mrb[0].mxu0 %v663
  %v798 = vpop.f32.mrb[0].mxu0
  %v799 = vadd.f32 0.0, %v798
  %v800 = vpop.f32.mrb[0].mxu0
  %801 = vmatprep.mubr.f32.mxu0 0.0
  %802 = vmatmul.mubr.f32.gmra.mrb[0].mxu0 %v666
  %v803 = vpop.f32.mrb[0].mxu0
  %v804 = vadd.f32 0.0, %v803
  %v805 = vpop.f32.mrb[0].mxu0
  %806 = vmatprep.mubr.f32.mxu0 0.0
  %807 = vmatmul.mubr.f32.gmra.mrb[0].mxu0 %v669
  %v808 = vpop.f32.mrb[0].mxu0
  %v809 = vadd.f32 0.0, %v808
  %v810 = vpop.f32.mrb[0].mxu0
  %811 = vmatprep.mubr.f32.mxu0 0.0
  %812 = vmatmul.mubr.f32.gmra.mrb[0].mxu0 %v672
  %v813 = vpop.f32.mrb[0].mxu0
  %v814 = vadd.f32 0.0, %v813
  %v815 = vpop.f32.mrb[0].mxu0
  %816 = vmatprep.mubr.f32.mxu0 0.0
  %817 = vmatmul.mubr.f32.gmra.mrb[0].mxu0 %v675
  %v818 = vpop.f32.mrb[0].mxu0
  %v819 = vadd.f32 0.0, %v818
  %v820 = vpop.f32.mrb[0].mxu0
  %821 = vdwg.mxu0
  %v822 = vadd.s32 %v407, 32
  %v823 = vadd.s32 %v407, 40
  %v824 = vadd.s32 %v407, 48
  %v825 = vadd.s32 %v407, 56
  %v826 = vadd.s32 %v407, 64
  %v827 = vadd.s32 %v407, 72
  %v828 = vadd.s32 %v407, 80
  %v829 = vadd.s32 %v407, 88
  %v830 = vadd.s32 %v407, 96
  %v831 = vadd.s32 %v407, 104
  %v832 = vadd.s32 %v407, 112
  %v833 = vadd.s32 %v407, 120
  %v834 = vshra.s32 %v822, 3
  %v835 = vshra.s32 %v823, 3
  %v836 = vshra.s32 %v824, 3
  %v837 = vshra.s32 %v825, 3
  %v838 = vshra.s32 %v826, 3
  %v839 = vshra.s32 %v827, 3
  %v840 = vshra.s32 %v828, 3
  %v841 = vshra.s32 %v829, 3
  %v842 = vshra.s32 %v830, 3
  %v843 = vshra.s32 %v831, 3
  %v844 = vshra.s32 %v832, 3
  %v845 = vshra.s32 %v833, 3
  %v846 = vand.u32 %v413, 7
  %v847 = vand.u32 %v414, 7
  %v848 = vand.u32 %v415, 7
  %v849 = vand.u32 %v416, 7
  %v850 = vand.u32 %v834, 7
  %v851 = vand.u32 %v835, 7
  %v852 = vand.u32 %v836, 7
  %v853 = vand.u32 %v837, 7
  %v854 = vand.u32 %v838, 7
  %v855 = vand.u32 %v839, 7
  %v856 = vand.u32 %v840, 7
  %v857 = vand.u32 %v841, 7
  %v858 = vand.u32 %v842, 7
  %v859 = vand.u32 %v843, 7
  %v860 = vand.u32 %v844, 7
  %v861 = vand.u32 %v845, 7
  %v862 = vand.u32 %v407, 7
  %v863 = vand.u32 %v408, 7
  %v864 = vand.u32 %v409, 7
  %v865 = vand.u32 %v410, 7
  %v866 = vand.u32 %v822, 7
  %v867 = vand.u32 %v823, 7
  %v868 = vand.u32 %v824, 7
  %v869 = vand.u32 %v825, 7
  %v870 = vand.u32 %v826, 7
  %v871 = vand.u32 %v827, 7
  %v872 = vand.u32 %v828, 7
  %v873 = vand.u32 %v829, 7
  %v874 = vand.u32 %v830, 7
  %v875 = vand.u32 %v831, 7
  %v876 = vand.u32 %v832, 7
  %v877 = vand.u32 %v833, 7
  %vm878 = vcmp.ge.s32.totalorder %v846, %v862
  %vm879 = vcmp.ge.s32.totalorder %v847, %v863
  %vm880 = vcmp.ge.s32.totalorder %v848, %v864
  %vm881 = vcmp.ge.s32.totalorder %v849, %v865
  %vm882 = vcmp.ge.s32.totalorder %v850, %v866
  %vm883 = vcmp.ge.s32.totalorder %v851, %v867
  %vm884 = vcmp.ge.s32.totalorder %v852, %v868
  %vm885 = vcmp.ge.s32.totalorder %v853, %v869
  %vm886 = vcmp.ge.s32.totalorder %v854, %v870
  %vm887 = vcmp.ge.s32.totalorder %v855, %v871
  %vm888 = vcmp.ge.s32.totalorder %v856, %v872
  %vm889 = vcmp.ge.s32.totalorder %v857, %v873
  %vm890 = vcmp.ge.s32.totalorder %v858, %v874
  %vm891 = vcmp.ge.s32.totalorder %v859, %v875
  %vm892 = vcmp.ge.s32.totalorder %v860, %v876
  %vm893 = vcmp.ge.s32.totalorder %v861, %v877
  %v894 = vsel %vm878, 1, 0
  %v895 = vsel %vm879, 1, 0
  %v896 = vsel %vm880, 1, 0
  %v897 = vsel %vm881, 1, 0
  %v898 = vsel %vm882, 1, 0
  %v899 = vsel %vm883, 1, 0
  %v900 = vsel %vm884, 1, 0
  %v901 = vsel %vm885, 1, 0
  %v902 = vsel %vm886, 1, 0
  %v903 = vsel %vm887, 1, 0
  %v904 = vsel %vm888, 1, 0
  %v905 = vsel %vm889, 1, 0
  %v906 = vsel %vm890, 1, 0
  %v907 = vsel %vm891, 1, 0
  %v908 = vsel %vm892, 1, 0
  %v909 = vsel %vm893, 1, 0
  %v910 = vcvt.s32.f32 %v894
  %v911 = vcvt.s32.f32 %v895
  %v912 = vcvt.s32.f32 %v896
  %v913 = vcvt.s32.f32 %v897
  %v914 = vcvt.s32.f32 %v898
  %v915 = vcvt.s32.f32 %v899
  %v916 = vcvt.s32.f32 %v900
  %v917 = vcvt.s32.f32 %v901
  %v918 = vcvt.s32.f32 %v902
  %v919 = vcvt.s32.f32 %v903
  %v920 = vcvt.s32.f32 %v904
  %v921 = vcvt.s32.f32 %v905
  %v922 = vcvt.s32.f32 %v906
  %v923 = vcvt.s32.f32 %v907
  %v924 = vcvt.s32.f32 %v908
  %v925 = vcvt.s32.f32 %v909
  %v926 = vmul.f32 %v744, 1.442695
  %v927 = vpow.pop %v926
  %v928 = vmul.f32 %v749, 1.442695
  %v929 = vpow.pop %v928
  %v930 = vmul.f32 %v754, 1.442695
  %v931 = vpow.pop %v930
  %v932 = vmul.f32 %v759, 1.442695
  %v933 = vpow.pop %v932
  %v934 = vmul.f32 %v764, 1.442695
  %v935 = vpow.pop %v934
  %v936 = vmul.f32 %v769, 1.442695
  %v937 = vpow.pop %v936
  %v938 = vmul.f32 %v774, 1.442695
  %v939 = vpow.pop %v938
  %v940 = vmul.f32 %v779, 1.442695
  %v941 = vpow.pop %v940
  %v942 = vmul.f32 %v784, 1.442695
  %v943 = vpow.pop %v942
  %v944 = vmul.f32 %v789, 1.442695
  %v945 = vpow.pop %v944
  %v946 = vmul.f32 %v794, 1.442695
  %v947 = vpow.pop %v946
  %v948 = vmul.f32 %v799, 1.442695
  %v949 = vpow.pop %v948
  %v950 = vmul.f32 %v804, 1.442695
  %v951 = vpow.pop %v950
  %v952 = vmul.f32 %v809, 1.442695
  %v953 = vpow.pop %v952
  %v954 = vmul.f32 %v814, 1.442695
  %v955 = vpow.pop %v954
  %v956 = vmul.f32 %v819, 1.442695
  %v957 = vpow.pop %v956
  %v958 = vmul.f32 %v927, %v910
  %v959 = vmul.f32 %v929, %v911
  %v960 = vmul.f32 %v931, %v912
  %v961 = vmul.f32 %v933, %v913
  %v962 = vmul.f32 %v935, %v914
  %v963 = vmul.f32 %v937, %v915
  %v964 = vmul.f32 %v939, %v916
  %v965 = vmul.f32 %v941, %v917
  %v966 = vmul.f32 %v943, %v918
  %v967 = vmul.f32 %v945, %v919
  %v968 = vmul.f32 %v947, %v920
  %v969 = vmul.f32 %v949, %v921
  %v970 = vmul.f32 %v951, %v922
  %v971 = vmul.f32 %v953, %v923
  %v972 = vmul.f32 %v955, %v924
  %v973 = vmul.f32 %v957, %v925
  %vm974 = vcmask 31744
  %v975 = vsel %vm974, %v958, 0.0
  %v976 = vrot.slane %v975, 4
  %v977 = vadd.f32 %v975, %v976
  %v978 = vrot.slane %v977, 2
  %v979 = vadd.f32 %v977, %v978
  %v980 = vrot.slane %v979, 1
  %v981 = vadd.f32 %v979, %v980
  %v982 = vsel %vm974, %v959, 0.0
  %v983 = vrot.slane %v982, 4
  %v984 = vadd.f32 %v982, %v983
  %v985 = vrot.slane %v984, 2
  %v986 = vadd.f32 %v984, %v985
  %v987 = vrot.slane %v986, 1
  %v988 = vadd.f32 %v986, %v987
  %v989 = vsel %vm974, %v960, 0.0
  %v990 = vrot.slane %v989, 4
  %v991 = vadd.f32 %v989, %v990
  %v992 = vrot.slane %v991, 2
  %v993 = vadd.f32 %v991, %v992
  %v994 = vrot.slane %v993, 1
  %v995 = vadd.f32 %v993, %v994
  %v996 = vsel %vm974, %v961, 0.0
  %v997 = vrot.slane %v996, 4
  %v998 = vadd.f32 %v996, %v997
  %v999 = vrot.slane %v998, 2
  %v1000 = vadd.f32 %v998, %v999
  %v1001 = vrot.slane %v1000, 1
  %v1002 = vadd.f32 %v1000, %v1001
  %v1003 = vsel %vm974, %v962, 0.0
  %v1004 = vrot.slane %v1003, 4
  %v1005 = vadd.f32 %v1003, %v1004
  %v1006 = vrot.slane %v1005, 2
  %v1007 = vadd.f32 %v1005, %v1006
  %v1008 = vrot.slane %v1007, 1
  %v1009 = vadd.f32 %v1007, %v1008
  %v1010 = vsel %vm974, %v963, 0.0
  %v1011 = vrot.slane %v1010, 4
  %v1012 = vadd.f32 %v1010, %v1011
  %v1013 = vrot.slane %v1012, 2
  %v1014 = vadd.f32 %v1012, %v1013
  %v1015 = vrot.slane %v1014, 1
  %v1016 = vadd.f32 %v1014, %v1015
  %v1017 = vsel %vm974, %v964, 0.0
  %v1018 = vrot.slane %v1017, 4
  %v1019 = vadd.f32 %v1017, %v1018
  %v1020 = vrot.slane %v1019, 2
  %v1021 = vadd.f32 %v1019, %v1020
  %v1022 = vrot.slane %v1021, 1
  %v1023 = vadd.f32 %v1021, %v1022
  %v1024 = vsel %vm974, %v965, 0.0
  %v1025 = vrot.slane %v1024, 4
  %v1026 = vadd.f32 %v1024, %v1025
  %v1027 = vrot.slane %v1026, 2
  %v1028 = vadd.f32 %v1026, %v1027
  %v1029 = vrot.slane %v1028, 1
  %v1030 = vadd.f32 %v1028, %v1029
  %v1031 = vsel %vm974, %v966, 0.0
  %v1032 = vrot.slane %v1031, 4
  %v1033 = vadd.f32 %v1031, %v1032
  %v1034 = vrot.slane %v1033, 2
  %v1035 = vadd.f32 %v1033, %v1034
  %v1036 = vrot.slane %v1035, 1
  %v1037 = vadd.f32 %v1035, %v1036
  %v1038 = vsel %vm974, %v967, 0.0
  %v1039 = vrot.slane %v1038, 4
  %v1040 = vadd.f32 %v1038, %v1039
  %v1041 = vrot.slane %v1040, 2
  %v1042 = vadd.f32 %v1040, %v1041
  %v1043 = vrot.slane %v1042, 1
  %v1044 = vadd.f32 %v1042, %v1043
  %v1045 = vsel %vm974, %v968, 0.0
  %v1046 = vrot.slane %v1045, 4
  %v1047 = vadd.f32 %v1045, %v1046
  %v1048 = vrot.slane %v1047, 2
  %v1049 = vadd.f32 %v1047, %v1048
  %v1050 = vrot.slane %v1049, 1
  %v1051 = vadd.f32 %v1049, %v1050
  %v1052 = vsel %vm974, %v969, 0.0
  %v1053 = vrot.slane %v1052, 4
  %v1054 = vadd.f32 %v1052, %v1053
  %v1055 = vrot.slane %v1054, 2
  %v1056 = vadd.f32 %v1054, %v1055
  %v1057 = vrot.slane %v1056, 1
  %v1058 = vadd.f32 %v1056, %v1057
  %v1059 = vsel %vm974, %v970, 0.0
  %v1060 = vrot.slane %v1059, 4
  %v1061 = vadd.f32 %v1059, %v1060
  %v1062 = vrot.slane %v1061, 2
  %v1063 = vadd.f32 %v1061, %v1062
  %v1064 = vrot.slane %v1063, 1
  %v1065 = vadd.f32 %v1063, %v1064
  %v1066 = vsel %vm974, %v971, 0.0
  %v1067 = vrot.slane %v1066, 4
  %v1068 = vadd.f32 %v1066, %v1067
  %v1069 = vrot.slane %v1068, 2
  %v1070 = vadd.f32 %v1068, %v1069
  %v1071 = vrot.slane %v1070, 1
  %v1072 = vadd.f32 %v1070, %v1071
  %v1073 = vsel %vm974, %v972, 0.0
  %v1074 = vrot.slane %v1073, 4
  %v1075 = vadd.f32 %v1073, %v1074
  %v1076 = vrot.slane %v1075, 2
  %v1077 = vadd.f32 %v1075, %v1076
  %v1078 = vrot.slane %v1077, 1
  %v1079 = vadd.f32 %v1077, %v1078
  %v1080 = vsel %vm974, %v973, 0.0
  %v1081 = vrot.slane %v1080, 4
  %v1082 = vadd.f32 %v1080, %v1081
  %v1083 = vrot.slane %v1082, 2
  %v1084 = vadd.f32 %v1082, %v1083
  %v1085 = vrot.slane %v1084, 1
  %v1086 = vadd.f32 %v1084, %v1085
  %v1087 = vrcp.pop %v981
  %v1088 = vrcp.pop %v988
  %v1089 = vrcp.pop %v995
  %v1090 = vrcp.pop %v1002
  %v1091 = vrcp.pop %v1009
  %v1092 = vrcp.pop %v1016
  %v1093 = vrcp.pop %v1023
  %v1094 = vrcp.pop %v1030
  %v1095 = vrcp.pop %v1037
  %v1096 = vrcp.pop %v1044
  %v1097 = vrcp.pop %v1051
  %v1098 = vrcp.pop %v1058
  %v1099 = vrcp.pop %v1065
  %v1100 = vrcp.pop %v1072
  %v1101 = vrcp.pop %v1079
  %v1102 = vrcp.pop %v1086
  %v1103 = vmul.f32 %v958, %v1087
  %v1104 = vmul.f32 %v959, %v1088
  %v1105 = vmul.f32 %v960, %v1089
  %v1106 = vmul.f32 %v961, %v1090
  %v1107 = vmul.f32 %v962, %v1091
  %v1108 = vmul.f32 %v963, %v1092
  %v1109 = vmul.f32 %v964, %v1093
  %v1110 = vmul.f32 %v965, %v1094
  %v1111 = vmul.f32 %v966, %v1095
  %v1112 = vmul.f32 %v967, %v1096
  %v1113 = vmul.f32 %v968, %v1097
  %v1114 = vmul.f32 %v969, %v1098
  %v1115 = vmul.f32 %v970, %v1099
  %v1116 = vmul.f32 %v971, %v1100
  %v1117 = vmul.f32 %v972, %v1101
  %v1118 = vmul.f32 %v973, %v1102
  %v1120 = vsel %vm974, %v1103, 0
  %v1123 = vsel %vm974, %v1104, 0
  %v1126 = vsel %vm974, %v1105, 0
  %v1129 = vsel %vm974, %v1106, 0
  %v1132 = vsel %vm974, %v1107, 0
  %v1135 = vsel %vm974, %v1108, 0
  %v1138 = vsel %vm974, %v1109, 0
  %v1141 = vsel %vm974, %v1110, 0
  %v1144 = vsel %vm974, %v1111, 0
  %v1147 = vsel %vm974, %v1112, 0
  %v1150 = vsel %vm974, %v1113, 0
  %v1153 = vsel %vm974, %v1114, 0
  %v1156 = vsel %vm974, %v1115, 0
  %v1159 = vsel %vm974, %v1116, 0
  %v1162 = vsel %vm974, %v1117, 0
  %v1165 = vsel %vm974, %v1118, 0
  %vm1167 = vcmask 1043456
  %v1169 = vsel %vm1167, %v432, 0
  %1171 = vmatprep.subr.mxu0 0.0
  %1172 = vmatpush1.msra.mxu0 %v1169
  %1173 = vmatprep.subr.mxu0 0.0
  %1174 = vmatpush1.msra.mxu0 0.0
  %1175 = vmatprep.subr.mxu0 0.0
  %1176 = vmatpush1.msra.mxu0 0.0
  %1177 = vmatprep.subr.mxu0 0.0
  %1178 = vmatpush1.msra.mxu0 0.0
  %1179 = vmatprep.subr.mxu0 0.0
  %1180 = vmatpush1.msra.mxu0 0.0
  %1181 = vmatprep.subr.mxu0 0.0
  %1182 = vmatpush1.msra.mxu0 0.0
  %1183 = vmatprep.subr.mxu0 0.0
  %1184 = vmatpush1.msra.mxu0 0.0
  %1185 = vmatprep.subr.mxu0 0.0
  %1186 = vmatpush1.msra.mxu0 0.0
  %1187 = vmatprep.subr.mxu0 0.0
  %1188 = vmatpush1.msra.mxu0 0.0
  %1189 = vmatprep.subr.mxu0 0.0
  %1190 = vmatpush1.msra.mxu0 0.0
  %1191 = vmatprep.subr.mxu0 0.0
  %1192 = vmatpush1.msra.mxu0 0.0
  %1193 = vmatprep.subr.mxu0 0.0
  %1194 = vmatpush1.msra.mxu0 0.0
  %1195 = vmatprep.subr.mxu0 0.0
  %1196 = vmatpush1.msra.mxu0 0.0
  %1197 = vmatprep.subr.mxu0 0.0
  %1198 = vmatpush1.msra.mxu0 0.0
  %1199 = vmatprep.subr.mxu0 0.0
  %1200 = vmatpush1.msra.mxu0 0.0
  %1201 = vmatprep.subr.mxu0 0.0
  %1202 = vmatpush1.msra.mxu0 0.0
  %1203 = vmatprep.subr.mxu0 0.0
  %1204 = vmatpush1.msra.mxu0 0.0
  %1205 = vmatprep.subr.mxu0 0.0
  %1206 = vmatpush1.msra.mxu0 0.0
  %1207 = vmatprep.subr.mxu0 0.0
  %1208 = vmatpush1.msra.mxu0 0.0
  %1209 = vmatprep.subr.mxu0 0.0
  %1210 = vmatpush1.msra.mxu0 0.0
  %1211 = vmatprep.subr.mxu0 0.0
  %1212 = vmatpush1.msra.mxu0 0.0
  %1213 = vmatprep.subr.mxu0 0.0
  %1214 = vmatpush1.msra.mxu0 0.0
  %1215 = vmatprep.subr.mxu0 0.0
  %1216 = vmatpush1.msra.mxu0 0.0
  %1217 = vmatprep.subr.mxu0 0.0
  %1218 = vmatpush1.msra.mxu0 0.0
  %1219 = vmatprep.subr.mxu0 0.0
  %1220 = vmatpush1.msra.mxu0 0.0
  %1221 = vmatprep.subr.mxu0 0.0
  %1222 = vmatpush1.msra.mxu0 0.0
  %1223 = vmatprep.subr.mxu0 0.0
  %1224 = vmatpush1.msra.mxu0 0.0
  %1225 = vmatprep.subr.mxu0 0.0
  %1226 = vmatpush1.msra.mxu0 0.0
  %1227 = vmatprep.subr.mxu0 0.0
  %1228 = vmatpush1.msra.mxu0 0.0
  %1229 = vmatprep.subr.mxu0 0.0
  %1230 = vmatpush1.msra.mxu0 0.0
  %1231 = vmatprep.subr.mxu0 0.0
  %1232 = vmatpush1.msra.mxu0 0.0
  %1233 = vmatprep.subr.mxu0 0.0
  %1234 = vmatpush1.msra.mxu0 0.0
  %1235 = vmatprep.mubr.f32.mxu0 0.0
  %1236 = vmatmul.mubr.f32.gmra.mrb[0].mxu0 %v1120
  %v1237 = vpop.f32.mrb[0].mxu0
  %v1238 = vadd.f32 0.0, %v1237
  %v1239 = vpop.f32.mrb[0].mxu0
  %1240 = vmatprep.mubr.f32.mxu0 0.0
  %1241 = vmatmul.mubr.f32.gmra.mrb[0].mxu0 %v1123
  %v1242 = vpop.f32.mrb[0].mxu0
  %v1243 = vadd.f32 0.0, %v1242
  %v1244 = vpop.f32.mrb[0].mxu0
  %1245 = vmatprep.mubr.f32.mxu0 0.0
  %1246 = vmatmul.mubr.f32.gmra.mrb[0].mxu0 %v1126
  %v1247 = vpop.f32.mrb[0].mxu0
  %v1248 = vadd.f32 0.0, %v1247
  %v1249 = vpop.f32.mrb[0].mxu0
  %1250 = vmatprep.mubr.f32.mxu0 0.0
  %1251 = vmatmul.mubr.f32.gmra.mrb[0].mxu0 %v1129
  %v1252 = vpop.f32.mrb[0].mxu0
  %v1253 = vadd.f32 0.0, %v1252
  %v1254 = vpop.f32.mrb[0].mxu0
  %1255 = vmatprep.mubr.f32.mxu0 0.0
  %1256 = vmatmul.mubr.f32.gmra.mrb[0].mxu0 %v1132
  %v1257 = vpop.f32.mrb[0].mxu0
  %v1258 = vadd.f32 0.0, %v1257
  %v1259 = vpop.f32.mrb[0].mxu0
  %1260 = vmatprep.mubr.f32.mxu0 0.0
  %1261 = vmatmul.mubr.f32.gmra.mrb[0].mxu0 %v1135
  %v1262 = vpop.f32.mrb[0].mxu0
  %v1263 = vadd.f32 0.0, %v1262
  %v1264 = vpop.f32.mrb[0].mxu0
  %1265 = vmatprep.mubr.f32.mxu0 0.0
  %1266 = vmatmul.mubr.f32.gmra.mrb[0].mxu0 %v1138
  %v1267 = vpop.f32.mrb[0].mxu0
  %v1268 = vadd.f32 0.0, %v1267
  %v1269 = vpop.f32.mrb[0].mxu0
  %1270 = vmatprep.mubr.f32.mxu0 0.0
  %1271 = vmatmul.mubr.f32.gmra.mrb[0].mxu0 %v1141
  %v1272 = vpop.f32.mrb[0].mxu0
  %v1273 = vadd.f32 0.0, %v1272
  %v1274 = vpop.f32.mrb[0].mxu0
  %1275 = vmatprep.mubr.f32.mxu0 0.0
  %1276 = vmatmul.mubr.f32.gmra.mrb[0].mxu0 %v1144
  %v1277 = vpop.f32.mrb[0].mxu0
  %v1278 = vadd.f32 0.0, %v1277
  %v1279 = vpop.f32.mrb[0].mxu0
  %1280 = vmatprep.mubr.f32.mxu0 0.0
  %1281 = vmatmul.mubr.f32.gmra.mrb[0].mxu0 %v1147
  %v1282 = vpop.f32.mrb[0].mxu0
  %v1283 = vadd.f32 0.0, %v1282
  %v1284 = vpop.f32.mrb[0].mxu0
  %1285 = vmatprep.mubr.f32.mxu0 0.0
  %1286 = vmatmul.mubr.f32.gmra.mrb[0].mxu0 %v1150
  %v1287 = vpop.f32.mrb[0].mxu0
  %v1288 = vadd.f32 0.0, %v1287
  %v1289 = vpop.f32.mrb[0].mxu0
  %1290 = vmatprep.mubr.f32.mxu0 0.0
  %1291 = vmatmul.mubr.f32.gmra.mrb[0].mxu0 %v1153
  %v1292 = vpop.f32.mrb[0].mxu0
  %v1293 = vadd.f32 0.0, %v1292
  %v1294 = vpop.f32.mrb[0].mxu0
  %1295 = vmatprep.mubr.f32.mxu0 0.0
  %1296 = vmatmul.mubr.f32.gmra.mrb[0].mxu0 %v1156
  %v1297 = vpop.f32.mrb[0].mxu0
  %v1298 = vadd.f32 0.0, %v1297
  %v1299 = vpop.f32.mrb[0].mxu0
  %1300 = vmatprep.mubr.f32.mxu0 0.0
  %1301 = vmatmul.mubr.f32.gmra.mrb[0].mxu0 %v1159
  %v1302 = vpop.f32.mrb[0].mxu0
  %v1303 = vadd.f32 0.0, %v1302
  %v1304 = vpop.f32.mrb[0].mxu0
  %1305 = vmatprep.mubr.f32.mxu0 0.0
  %1306 = vmatmul.mubr.f32.gmra.mrb[0].mxu0 %v1162
  %v1307 = vpop.f32.mrb[0].mxu0
  %v1308 = vadd.f32 0.0, %v1307
  %v1309 = vpop.f32.mrb[0].mxu0
  %1310 = vmatprep.mubr.f32.mxu0 0.0
  %1311 = vmatmul.mubr.f32.gmra.mrb[0].mxu0 %v1165
  %v1312 = vpop.f32.mrb[0].mxu0
  %v1313 = vadd.f32 0.0, %v1312
  %v1314 = vpop.f32.mrb[0].mxu0
  %1315 = vdwg.mxu0
  %v1316 = vmul.f32 %v1238, %v398
  %v1317 = vmul.f32 %v1243, %v398
  %v1318 = vmul.f32 %v1248, %v398
  %v1319 = vmul.f32 %v1253, %v398
  %v1320 = vmul.f32 %v1258, %v398
  %v1321 = vmul.f32 %v1263, %v398
  %v1322 = vmul.f32 %v1268, %v398
  %v1323 = vmul.f32 %v1273, %v398
  %v1324 = vmul.f32 %v1278, %v403
  %v1325 = vmul.f32 %v1283, %v403
  %v1326 = vmul.f32 %v1288, %v403
  %v1327 = vmul.f32 %v1293, %v403
  %v1328 = vmul.f32 %v1298, %v403
  %v1329 = vmul.f32 %v1303, %v403
  %v1330 = vmul.f32 %v1308, %v403
  %v1331 = vmul.f32 %v1313, %v403
  %v1332 = vsel %vm109, %v1316, 0.0
  %v1333 = vrot.slane %v1332, 4
  %v1334 = vadd.f32 %v1332, %v1333
  %v1335 = vrot.slane %v1334, 2
  %v1336 = vadd.f32 %v1334, %v1335
  %v1337 = vrot.slane %v1336, 1
  %v1338 = vadd.f32 %v1336, %v1337
  %v1339 = vsel %vm109, %v1317, 0.0
  %v1340 = vrot.slane %v1339, 4
  %v1341 = vadd.f32 %v1339, %v1340
  %v1342 = vrot.slane %v1341, 2
  %v1343 = vadd.f32 %v1341, %v1342
  %v1344 = vrot.slane %v1343, 1
  %v1345 = vadd.f32 %v1343, %v1344
  %v1346 = vsel %vm109, %v1318, 0.0
  %v1347 = vrot.slane %v1346, 4
  %v1348 = vadd.f32 %v1346, %v1347
  %v1349 = vrot.slane %v1348, 2
  %v1350 = vadd.f32 %v1348, %v1349
  %v1351 = vrot.slane %v1350, 1
  %v1352 = vadd.f32 %v1350, %v1351
  %v1353 = vsel %vm109, %v1319, 0.0
  %v1354 = vrot.slane %v1353, 4
  %v1355 = vadd.f32 %v1353, %v1354
  %v1356 = vrot.slane %v1355, 2
  %v1357 = vadd.f32 %v1355, %v1356
  %v1358 = vrot.slane %v1357, 1
  %v1359 = vadd.f32 %v1357, %v1358
  %v1360 = vsel %vm109, %v1320, 0.0
  %v1361 = vrot.slane %v1360, 4
  %v1362 = vadd.f32 %v1360, %v1361
  %v1363 = vrot.slane %v1362, 2
  %v1364 = vadd.f32 %v1362, %v1363
  %v1365 = vrot.slane %v1364, 1
  %v1366 = vadd.f32 %v1364, %v1365
  %v1367 = vsel %vm109, %v1321, 0.0
  %v1368 = vrot.slane %v1367, 4
  %v1369 = vadd.f32 %v1367, %v1368
  %v1370 = vrot.slane %v1369, 2
  %v1371 = vadd.f32 %v1369, %v1370
  %v1372 = vrot.slane %v1371, 1
  %v1373 = vadd.f32 %v1371, %v1372
  %v1374 = vsel %vm109, %v1322, 0.0
  %v1375 = vrot.slane %v1374, 4
  %v1376 = vadd.f32 %v1374, %v1375
  %v1377 = vrot.slane %v1376, 2
  %v1378 = vadd.f32 %v1376, %v1377
  %v1379 = vrot.slane %v1378, 1
  %v1380 = vadd.f32 %v1378, %v1379
  %v1381 = vsel %vm109, %v1323, 0.0
  %v1382 = vrot.slane %v1381, 4
  %v1383 = vadd.f32 %v1381, %v1382
  %v1384 = vrot.slane %v1383, 2
  %v1385 = vadd.f32 %v1383, %v1384
  %v1386 = vrot.slane %v1385, 1
  %v1387 = vadd.f32 %v1385, %v1386
  %v1388 = vsel %vm109, %v1324, 0.0
  %v1389 = vrot.slane %v1388, 4
  %v1390 = vadd.f32 %v1388, %v1389
  %v1391 = vrot.slane %v1390, 2
  %v1392 = vadd.f32 %v1390, %v1391
  %v1393 = vrot.slane %v1392, 1
  %v1394 = vadd.f32 %v1392, %v1393
  %v1395 = vsel %vm109, %v1325, 0.0
  %v1396 = vrot.slane %v1395, 4
  %v1397 = vadd.f32 %v1395, %v1396
  %v1398 = vrot.slane %v1397, 2
  %v1399 = vadd.f32 %v1397, %v1398
  %v1400 = vrot.slane %v1399, 1
  %v1401 = vadd.f32 %v1399, %v1400
  %v1402 = vsel %vm109, %v1326, 0.0
  %v1403 = vrot.slane %v1402, 4
  %v1404 = vadd.f32 %v1402, %v1403
  %v1405 = vrot.slane %v1404, 2
  %v1406 = vadd.f32 %v1404, %v1405
  %v1407 = vrot.slane %v1406, 1
  %v1408 = vadd.f32 %v1406, %v1407
  %v1409 = vsel %vm109, %v1327, 0.0
  %v1410 = vrot.slane %v1409, 4
  %v1411 = vadd.f32 %v1409, %v1410
  %v1412 = vrot.slane %v1411, 2
  %v1413 = vadd.f32 %v1411, %v1412
  %v1414 = vrot.slane %v1413, 1
  %v1415 = vadd.f32 %v1413, %v1414
  %v1416 = vsel %vm109, %v1328, 0.0
  %v1417 = vrot.slane %v1416, 4
  %v1418 = vadd.f32 %v1416, %v1417
  %v1419 = vrot.slane %v1418, 2
  %v1420 = vadd.f32 %v1418, %v1419
  %v1421 = vrot.slane %v1420, 1
  %v1422 = vadd.f32 %v1420, %v1421
  %v1423 = vsel %vm109, %v1329, 0.0
  %v1424 = vrot.slane %v1423, 4
  %v1425 = vadd.f32 %v1423, %v1424
  %v1426 = vrot.slane %v1425, 2
  %v1427 = vadd.f32 %v1425, %v1426
  %v1428 = vrot.slane %v1427, 1
  %v1429 = vadd.f32 %v1427, %v1428
  %v1430 = vsel %vm109, %v1330, 0.0
  %v1431 = vrot.slane %v1430, 4
  %v1432 = vadd.f32 %v1430, %v1431
  %v1433 = vrot.slane %v1432, 2
  %v1434 = vadd.f32 %v1432, %v1433
  %v1435 = vrot.slane %v1434, 1
  %v1436 = vadd.f32 %v1434, %v1435
  %v1437 = vsel %vm109, %v1331, 0.0
  %v1438 = vrot.slane %v1437, 4
  %v1439 = vadd.f32 %v1437, %v1438
  %v1440 = vrot.slane %v1439, 2
  %v1441 = vadd.f32 %v1439, %v1440
  %v1442 = vrot.slane %v1441, 1
  %v1443 = vadd.f32 %v1441, %v1442
  %v1444 = vld [vmem:[%s4] sm:$0xff]
  %v1445 = vld [vmem:[%s4 + $0x8] sm:$0xff]
  %v1446 = vld [vmem:[%s4 + $0x10] sm:$0xff]
  %v1447 = vld [vmem:[%s4 + $0x18] sm:$0xff]
  %v1448 = vlaneseq
  %v1449 = vshrl.u32 %v1448, 7
  %v1450 = vsub.s32 5, %v1449
  %v1451 = vrot.slane %v36, %v1450
  %vm1468 = vcmask 1041409
  %v1469 = vsel %vm1468, %v1345, %v1338
  %vm1470 = vcmask 1042434
  %v1471 = vsel %vm1470, %v1352, %v1469
  %vm1472 = vcmask 1043459
  %v1473 = vsel %vm1472, %v1359, %v1471
  %vm1474 = vcmask 1044484
  %v1475 = vsel %vm1474, %v1366, %v1473
  %vm1476 = vcmask 1045509
  %v1477 = vsel %vm1476, %v1373, %v1475
  %vm1478 = vcmask 1046534
  %v1479 = vsel %vm1478, %v1380, %v1477
  %vm1480 = vcmask 1047559
  %v1481 = vsel %vm1480, %v1387, %v1479
  %v1482 = vsel %vm1468, %v1401, %v1394
  %v1483 = vsel %vm1470, %v1408, %v1482
  %v1484 = vsel %vm1472, %v1415, %v1483
  %v1485 = vsel %vm1474, %v1422, %v1484
  %v1486 = vsel %vm1476, %v1429, %v1485
  %v1487 = vsel %vm1478, %v1436, %v1486
  %v1488 = vsel %vm1480, %v1443, %v1487
  %v1489 = vsel %vm109, %v1481, 0
  %v1491 = vsel %vm109, %v1488, 0
  %1493 = vmatprep.subr.mxu0 0.0
  %1494 = vmatpush1.msra.mxu0 %v1444
  %1495 = vmatprep.subr.mxu0 0.0
  %1496 = vmatpush1.msra.mxu0 %v1445
  %1497 = vmatprep.subr.mxu0 0.0
  %1498 = vmatpush1.msra.mxu0 %v1446
  %1499 = vmatprep.subr.mxu0 0.0
  %1500 = vmatpush1.msra.mxu0 %v1447
  %1501 = vmatprep.subr.mxu0 0.0
  %1502 = vmatpush1.msra.mxu0 0.0
  %1503 = vmatprep.subr.mxu0 0.0
  %1504 = vmatpush1.msra.mxu0 0.0
  %1505 = vmatprep.subr.mxu0 0.0
  %1506 = vmatpush1.msra.mxu0 0.0
  %1507 = vmatprep.subr.mxu0 0.0
  %1508 = vmatpush1.msra.mxu0 0.0
  %1509 = vmatprep.subr.mxu0 0.0
  %1510 = vmatpush1.msra.mxu0 0.0
  %1511 = vmatprep.subr.mxu0 0.0
  %1512 = vmatpush1.msra.mxu0 0.0
  %1513 = vmatprep.subr.mxu0 0.0
  %1514 = vmatpush1.msra.mxu0 0.0
  %1515 = vmatprep.subr.mxu0 0.0
  %1516 = vmatpush1.msra.mxu0 0.0
  %1517 = vmatprep.subr.mxu0 0.0
  %1518 = vmatpush1.msra.mxu0 0.0
  %1519 = vmatprep.subr.mxu0 0.0
  %1520 = vmatpush1.msra.mxu0 0.0
  %1521 = vmatprep.subr.mxu0 0.0
  %1522 = vmatpush1.msra.mxu0 0.0
  %1523 = vmatprep.subr.mxu0 0.0
  %1524 = vmatpush1.msra.mxu0 0.0
  %1525 = vmatprep.subr.mxu0 0.0
  %1526 = vmatpush1.msra.mxu0 0.0
  %1527 = vmatprep.subr.mxu0 0.0
  %1528 = vmatpush1.msra.mxu0 0.0
  %1529 = vmatprep.subr.mxu0 0.0
  %1530 = vmatpush1.msra.mxu0 0.0
  %1531 = vmatprep.subr.mxu0 0.0
  %1532 = vmatpush1.msra.mxu0 0.0
  %1533 = vmatprep.subr.mxu0 0.0
  %1534 = vmatpush1.msra.mxu0 0.0
  %1535 = vmatprep.subr.mxu0 0.0
  %1536 = vmatpush1.msra.mxu0 0.0
  %1537 = vmatprep.subr.mxu0 0.0
  %1538 = vmatpush1.msra.mxu0 0.0
  %1539 = vmatprep.subr.mxu0 0.0
  %1540 = vmatpush1.msra.mxu0 0.0
  %1541 = vmatprep.subr.mxu0 0.0
  %1542 = vmatpush1.msra.mxu0 0.0
  %1543 = vmatprep.subr.mxu0 0.0
  %1544 = vmatpush1.msra.mxu0 0.0
  %1545 = vmatprep.subr.mxu0 0.0
  %1546 = vmatpush1.msra.mxu0 0.0
  %1547 = vmatprep.subr.mxu0 0.0
  %1548 = vmatpush1.msra.mxu0 0.0
  %1549 = vmatprep.subr.mxu0 0.0
  %1550 = vmatpush1.msra.mxu0 0.0
  %1551 = vmatprep.subr.mxu0 0.0
  %1552 = vmatpush1.msra.mxu0 0.0
  %1553 = vmatprep.subr.mxu0 0.0
  %1554 = vmatpush1.msra.mxu0 0.0
  %1555 = vmatprep.subr.mxu0 0.0
  %1556 = vmatpush1.msra.mxu0 0.0
  %1557 = vmatprep.mubr.f32.mxu0 0.0
  %1558 = vmatmul.mubr.f32.gmra.mrb[0].mxu0 %v1489
  %v1559 = vpop.f32.mrb[0].mxu0
  %v1560 = vadd.f32 %v1451, %v1559
  %v1561 = vpop.f32.mrb[0].mxu0
  %1562 = vmatprep.mubr.f32.mxu0 0.0
  %1563 = vmatmul.mubr.f32.gmra.mrb[0].mxu0 %v1491
  %v1564 = vpop.f32.mrb[0].mxu0
  %v1565 = vadd.f32 %v1451, %v1564
  %v1566 = vpop.f32.mrb[0].mxu0
  %1567 = vdwg.mxu0
  %v1568 = vadd.f32 %v107, %v1560
  %v1569 = vadd.f32 %v108, %v1565
  %v1570 = vsel %vm109, %v1568, 0.0
  %1571 = vadd.xlane.f32.xlu0 %v1570
  %v1572 = vpop.xlane.xlu0 %1571
  %v1573 = vsel %vm109, %v1569, 0.0
  %1574 = vadd.xlane.f32.xlu0 %v1573
  %v1575 = vpop.xlane.xlu0 %1574
  %v1576 = vmul.f32 %v1572, %v116
  %v1577 = vmul.f32 %v1575, %v116
  %v1578 = vsub.f32 %v1568, %v1576
  %v1579 = vsub.f32 %v1569, %v1577
  %v1580 = vmul.f32 %v1578, %v1578
  %v1581 = vmul.f32 %v1579, %v1579
  %v1582 = vsel %vm109, %v1580, 0.0
  %1583 = vadd.xlane.f32.xlu0 %v1582
  %v1584 = vpop.xlane.xlu0 %1583
  %v1585 = vsel %vm109, %v1581, 0.0
  %1586 = vadd.xlane.f32.xlu0 %v1585
  %v1587 = vpop.xlane.xlu0 %1586
  %v1588 = vmul.f32 %v1584, %v116
  %v1589 = vmul.f32 %v1587, %v116
  %v1590 = vadd.f32 %v1588, 1e-05
  %v1591 = vadd.f32 %v1589, 1e-05
  %v1592 = vrsqrt.pop %v1590
  %v1593 = vrsqrt.pop %v1591
  %v1594 = vmul.f32 %v1578, %v1592
  %v1595 = vmul.f32 %v1579, %v1593
  %v1596 = vlaneseq
  %v1597 = vshrl.u32 %v1596, 7
  %v1598 = vsub.s32 6, %v1597
  %v1599 = vrot.slane %v36, %v1598
  %v1600 = vmul.f32 %v1594, %v1599
  %v1601 = vmul.f32 %v1595, %v1599
  %v1602 = vlaneseq
  %v1603 = vshrl.u32 %v1602, 7
  %v1604 = vsub.s32 7, %v1603
  %v1605 = vrot.slane %v36, %v1604
  %v1606 = vadd.f32 %v1600, %v1605
  %v1607 = vadd.f32 %v1601, %v1605
  %v1608 = vld [vmem:[%s5] sm:$0xff]
  %v1609 = vld [vmem:[%s5 + $0x8] sm:$0xff]
  %v1610 = vld [vmem:[%s5 + $0x10] sm:$0xff]
  %v1611 = vld [vmem:[%s5 + $0x18] sm:$0xff]
  %v1612 = vlaneseq
  %v1613 = vshrl.u32 %v1612, 7
  %v1614 = vsub.s32 0, %v1613
  %v1615 = vrot.slane %v37, %v1614
  %v1617 = vsel %vm109, %v1606, 0
  %v1620 = vsel %vm109, %v1607, 0
  %1622 = vmatprep.subr.mxu0 0.0
  %1623 = vmatpush1.msra.mxu0 %v1608
  %1624 = vmatprep.subr.mxu0 0.0
  %1625 = vmatpush1.msra.mxu0 %v1609
  %1626 = vmatprep.subr.mxu0 0.0
  %1627 = vmatpush1.msra.mxu0 %v1610
  %1628 = vmatprep.subr.mxu0 0.0
  %1629 = vmatpush1.msra.mxu0 %v1611
  %1630 = vmatprep.subr.mxu0 0.0
  %1631 = vmatpush1.msra.mxu0 0.0
  %1632 = vmatprep.subr.mxu0 0.0
  %1633 = vmatpush1.msra.mxu0 0.0
  %1634 = vmatprep.subr.mxu0 0.0
  %1635 = vmatpush1.msra.mxu0 0.0
  %1636 = vmatprep.subr.mxu0 0.0
  %1637 = vmatpush1.msra.mxu0 0.0
  %1638 = vmatprep.subr.mxu0 0.0
  %1639 = vmatpush1.msra.mxu0 0.0
  %1640 = vmatprep.subr.mxu0 0.0
  %1641 = vmatpush1.msra.mxu0 0.0
  %1642 = vmatprep.subr.mxu0 0.0
  %1643 = vmatpush1.msra.mxu0 0.0
  %1644 = vmatprep.subr.mxu0 0.0
  %1645 = vmatpush1.msra.mxu0 0.0
  %1646 = vmatprep.subr.mxu0 0.0
  %1647 = vmatpush1.msra.mxu0 0.0
  %1648 = vmatprep.subr.mxu0 0.0
  %1649 = vmatpush1.msra.mxu0 0.0
  %1650 = vmatprep.subr.mxu0 0.0
  %1651 = vmatpush1.msra.mxu0 0.0
  %1652 = vmatprep.subr.mxu0 0.0
  %1653 = vmatpush1.msra.mxu0 0.0
  %1654 = vmatprep.subr.mxu0 0.0
  %1655 = vmatpush1.msra.mxu0 0.0
  %1656 = vmatprep.subr.mxu0 0.0
  %1657 = vmatpush1.msra.mxu0 0.0
  %1658 = vmatprep.subr.mxu0 0.0
  %1659 = vmatpush1.msra.mxu0 0.0
  %1660 = vmatprep.subr.mxu0 0.0
  %1661 = vmatpush1.msra.mxu0 0.0
  %1662 = vmatprep.subr.mxu0 0.0
  %1663 = vmatpush1.msra.mxu0 0.0
  %1664 = vmatprep.subr.mxu0 0.0
  %1665 = vmatpush1.msra.mxu0 0.0
  %1666 = vmatprep.subr.mxu0 0.0
  %1667 = vmatpush1.msra.mxu0 0.0
  %1668 = vmatprep.subr.mxu0 0.0
  %1669 = vmatpush1.msra.mxu0 0.0
  %1670 = vmatprep.subr.mxu0 0.0
  %1671 = vmatpush1.msra.mxu0 0.0
  %1672 = vmatprep.subr.mxu0 0.0
  %1673 = vmatpush1.msra.mxu0 0.0
  %1674 = vmatprep.subr.mxu0 0.0
  %1675 = vmatpush1.msra.mxu0 0.0
  %1676 = vmatprep.subr.mxu0 0.0
  %1677 = vmatpush1.msra.mxu0 0.0
  %1678 = vmatprep.subr.mxu0 0.0
  %1679 = vmatpush1.msra.mxu0 0.0
  %1680 = vmatprep.subr.mxu0 0.0
  %1681 = vmatpush1.msra.mxu0 0.0
  %1682 = vmatprep.subr.mxu0 0.0
  %1683 = vmatpush1.msra.mxu0 0.0
  %1684 = vmatprep.subr.mxu0 0.0
  %1685 = vmatpush1.msra.mxu0 0.0
  %1686 = vmatprep.mubr.f32.mxu0 0.0
  %1687 = vmatmul.mubr.f32.gmra.mrb[0].mxu0 %v1617
  %v1688 = vpop.f32.mrb[0].mxu0
  %v1689 = vadd.f32 %v1615, %v1688
  %v1690 = vpop.f32.mrb[0].mxu0
  %1691 = vmatprep.mubr.f32.mxu0 0.0
  %1692 = vmatmul.mubr.f32.gmra.mrb[0].mxu0 %v1620
  %v1693 = vpop.f32.mrb[0].mxu0
  %v1694 = vadd.f32 %v1615, %v1693
  %v1695 = vpop.f32.mrb[0].mxu0
  %1696 = vdwg.mxu0
  %v1697 = vmul.f32 %v1689, %v1689
  %v1698 = vmul.f32 %v1694, %v1694
  %v1699 = vmul.f32 %v1689, %v1697
  %v1700 = vmul.f32 %v1694, %v1698
  %v1701 = vmul.f32 %v1699, 0.044715
  %v1702 = vmul.f32 %v1700, 0.044715
  %v1703 = vadd.f32 %v1689, %v1701
  %v1704 = vadd.f32 %v1694, %v1702
  %v1705 = vmul.f32 %v1703, 0.7978846
  %v1706 = vmul.f32 %v1704, 0.7978846
  %v1707 = vtanh.pop %v1705
  %v1708 = vtanh.pop %v1706
  %v1709 = vadd.f32 %v1707, 1.0
  %v1710 = vadd.f32 %v1708, 1.0
  %v1711 = vmul.f32 %v1709, 0.5
  %v1712 = vmul.f32 %v1710, 0.5
  %v1713 = vmul.f32 %v1689, %v1711
  %v1714 = vmul.f32 %v1694, %v1712
  %v1715 = vld [vmem:[%s6] sm:$0xff]
  %v1716 = vld [vmem:[%s6 + $0x8] sm:$0xff]
  %v1717 = vld [vmem:[%s6 + $0x10] sm:$0xff]
  %v1718 = vld [vmem:[%s6 + $0x18] sm:$0xff]
  %v1719 = vld [vmem:[%s6 + $0x20] sm:$0xff]
  %v1720 = vld [vmem:[%s6 + $0x28] sm:$0xff]
  %v1721 = vld [vmem:[%s6 + $0x30] sm:$0xff]
  %v1722 = vld [vmem:[%s6 + $0x38] sm:$0xff]
  %v1723 = vld [vmem:[%s6 + $0x40] sm:$0xff]
  %v1724 = vld [vmem:[%s6 + $0x48] sm:$0xff]
  %v1725 = vld [vmem:[%s6 + $0x50] sm:$0xff]
  %v1726 = vld [vmem:[%s6 + $0x58] sm:$0xff]
  %v1727 = vld [vmem:[%s6 + $0x60] sm:$0xff]
  %v1728 = vld [vmem:[%s6 + $0x68] sm:$0xff]
  %v1729 = vld [vmem:[%s6 + $0x70] sm:$0xff]
  %v1730 = vld [vmem:[%s6 + $0x78] sm:$0xff]
  %v1731 = vlaneseq
  %v1732 = vshrl.u32 %v1731, 7
  %v1733 = vsub.s32 1, %v1732
  %v1734 = vrot.slane %v37, %v1733
  %1735 = vmatprep.subr.mxu0 0.0
  %1736 = vmatpush1.msra.mxu0 %v1715
  %1737 = vmatprep.subr.mxu0 0.0
  %1738 = vmatpush1.msra.mxu0 %v1716
  %1739 = vmatprep.subr.mxu0 0.0
  %1740 = vmatpush1.msra.mxu0 %v1717
  %1741 = vmatprep.subr.mxu0 0.0
  %1742 = vmatpush1.msra.mxu0 %v1718
  %1743 = vmatprep.subr.mxu0 0.0
  %1744 = vmatpush1.msra.mxu0 %v1719
  %1745 = vmatprep.subr.mxu0 0.0
  %1746 = vmatpush1.msra.mxu0 %v1720
  %1747 = vmatprep.subr.mxu0 0.0
  %1748 = vmatpush1.msra.mxu0 %v1721
  %1749 = vmatprep.subr.mxu0 0.0
  %1750 = vmatpush1.msra.mxu0 %v1722
  %1751 = vmatprep.subr.mxu0 0.0
  %1752 = vmatpush1.msra.mxu0 %v1723
  %1753 = vmatprep.subr.mxu0 0.0
  %1754 = vmatpush1.msra.mxu0 %v1724
  %1755 = vmatprep.subr.mxu0 0.0
  %1756 = vmatpush1.msra.mxu0 %v1725
  %1757 = vmatprep.subr.mxu0 0.0
  %1758 = vmatpush1.msra.mxu0 %v1726
  %1759 = vmatprep.subr.mxu0 0.0
  %1760 = vmatpush1.msra.mxu0 %v1727
  %1761 = vmatprep.subr.mxu0 0.0
  %1762 = vmatpush1.msra.mxu0 %v1728
  %1763 = vmatprep.subr.mxu0 0.0
  %1764 = vmatpush1.msra.mxu0 %v1729
  %1765 = vmatprep.subr.mxu0 0.0
  %1766 = vmatpush1.msra.mxu0 %v1730
  %1767 = vmatprep.subr.mxu0 0.0
  %1768 = vmatpush1.msra.mxu0 0.0
  %1769 = vmatprep.subr.mxu0 0.0
  %1770 = vmatpush1.msra.mxu0 0.0
  %1771 = vmatprep.subr.mxu0 0.0
  %1772 = vmatpush1.msra.mxu0 0.0
  %1773 = vmatprep.subr.mxu0 0.0
  %1774 = vmatpush1.msra.mxu0 0.0
  %1775 = vmatprep.subr.mxu0 0.0
  %1776 = vmatpush1.msra.mxu0 0.0
  %1777 = vmatprep.subr.mxu0 0.0
  %1778 = vmatpush1.msra.mxu0 0.0
  %1779 = vmatprep.subr.mxu0 0.0
  %1780 = vmatpush1.msra.mxu0 0.0
  %1781 = vmatprep.subr.mxu0 0.0
  %1782 = vmatpush1.msra.mxu0 0.0
  %1783 = vmatprep.subr.mxu0 0.0
  %1784 = vmatpush1.msra.mxu0 0.0
  %1785 = vmatprep.subr.mxu0 0.0
  %1786 = vmatpush1.msra.mxu0 0.0
  %1787 = vmatprep.subr.mxu0 0.0
  %1788 = vmatpush1.msra.mxu0 0.0
  %1789 = vmatprep.subr.mxu0 0.0
  %1790 = vmatpush1.msra.mxu0 0.0
  %1791 = vmatprep.subr.mxu0 0.0
  %1792 = vmatpush1.msra.mxu0 0.0
  %1793 = vmatprep.subr.mxu0 0.0
  %1794 = vmatpush1.msra.mxu0 0.0
  %1795 = vmatprep.subr.mxu0 0.0
  %1796 = vmatpush1.msra.mxu0 0.0
  %1797 = vmatprep.subr.mxu0 0.0
  %1798 = vmatpush1.msra.mxu0 0.0
  %1799 = vmatprep.mubr.f32.mxu0 0.0
  %1800 = vmatmul.mubr.f32.gmra.mrb[0].mxu0 %v1713
  %v1801 = vpop.f32.mrb[0].mxu0
  %v1802 = vadd.f32 %v1734, %v1801
  %v1803 = vpop.f32.mrb[0].mxu0
  %1804 = vmatprep.mubr.f32.mxu0 0.0
  %1805 = vmatmul.mubr.f32.gmra.mrb[0].mxu0 %v1714
  %v1806 = vpop.f32.mrb[0].mxu0
  %v1807 = vadd.f32 %v1734, %v1806
  %v1808 = vpop.f32.mrb[0].mxu0
  %1809 = vdwg.mxu0
  %v1810 = vadd.f32 %v1568, %v1802
  %v1811 = vadd.f32 %v1569, %v1807
  %v1812 = vsel %vm109, %v1810, 0.0
  %1813 = vadd.xlane.f32.xlu0 %v1812
  %v1814 = vpop.xlane.xlu0 %1813
  %v1815 = vsel %vm109, %v1811, 0.0
  %1816 = vadd.xlane.f32.xlu0 %v1815
  %v1817 = vpop.xlane.xlu0 %1816
  %v1818 = vmul.f32 %v1814, %v116
  %v1819 = vmul.f32 %v1817, %v116
  %v1820 = vsub.f32 %v1810, %v1818
  %v1821 = vsub.f32 %v1811, %v1819
  %v1822 = vmul.f32 %v1820, %v1820
  %v1823 = vmul.f32 %v1821, %v1821
  %v1824 = vsel %vm109, %v1822, 0.0
  %1825 = vadd.xlane.f32.xlu0 %v1824
  %v1826 = vpop.xlane.xlu0 %1825
  %v1827 = vsel %vm109, %v1823, 0.0
  %1828 = vadd.xlane.f32.xlu0 %v1827
  %v1829 = vpop.xlane.xlu0 %1828
  %v1830 = vmul.f32 %v1826, %v116
  %v1831 = vmul.f32 %v1829, %v116
  %v1832 = vadd.f32 %v1830, 1e-05
  %v1833 = vadd.f32 %v1831, 1e-05
  %v1834 = vrsqrt.pop %v1832
  %v1835 = vrsqrt.pop %v1833
  %v1836 = vmul.f32 %v1820, %v1834
  %v1837 = vmul.f32 %v1821, %v1835
  %v1838 = vlaneseq
  %v1839 = vshrl.u32 %v1838, 7
  %v1840 = vsub.s32 2, %v1839
  %v1841 = vrot.slane %v37, %v1840
  %v1842 = vmul.f32 %v1836, %v1841
  %v1843 = vmul.f32 %v1837, %v1841
  %v1844 = vlaneseq
  %v1845 = vshrl.u32 %v1844, 7
  %v1846 = vsub.s32 3, %v1845
  %v1847 = vrot.slane %v37, %v1846
  %v1848 = vadd.f32 %v1842, %v1847
  %v1849 = vadd.f32 %v1843, %v1847
  %v1850 = vld [vmem:[%s7] sm:$0xff]
  %v1851 = vld [vmem:[%s7 + $0x8] sm:$0xff]
  %v1852 = vld [vmem:[%s7 + $0x10] sm:$0xff]
  %v1853 = vld [vmem:[%s7 + $0x18] sm:$0xff]
  %v1854 = vlaneseq
  %v1855 = vshrl.u32 %v1854, 7
  %v1856 = vsub.s32 4, %v1855
  %v1857 = vrot.slane %v37, %v1856
  %v1859 = vsel %vm109, %v1848, 0
  %v1862 = vsel %vm109, %v1849, 0
  %1864 = vmatprep.subr.mxu0 0.0
  %1865 = vmatpush1.msra.mxu0 %v1850
  %1866 = vmatprep.subr.mxu0 0.0
  %1867 = vmatpush1.msra.mxu0 %v1851
  %1868 = vmatprep.subr.mxu0 0.0
  %1869 = vmatpush1.msra.mxu0 %v1852
  %1870 = vmatprep.subr.mxu0 0.0
  %1871 = vmatpush1.msra.mxu0 %v1853
  %1872 = vmatprep.subr.mxu0 0.0
  %1873 = vmatpush1.msra.mxu0 0.0
  %1874 = vmatprep.subr.mxu0 0.0
  %1875 = vmatpush1.msra.mxu0 0.0
  %1876 = vmatprep.subr.mxu0 0.0
  %1877 = vmatpush1.msra.mxu0 0.0
  %1878 = vmatprep.subr.mxu0 0.0
  %1879 = vmatpush1.msra.mxu0 0.0
  %1880 = vmatprep.subr.mxu0 0.0
  %1881 = vmatpush1.msra.mxu0 0.0
  %1882 = vmatprep.subr.mxu0 0.0
  %1883 = vmatpush1.msra.mxu0 0.0
  %1884 = vmatprep.subr.mxu0 0.0
  %1885 = vmatpush1.msra.mxu0 0.0
  %1886 = vmatprep.subr.mxu0 0.0
  %1887 = vmatpush1.msra.mxu0 0.0
  %1888 = vmatprep.subr.mxu0 0.0
  %1889 = vmatpush1.msra.mxu0 0.0
  %1890 = vmatprep.subr.mxu0 0.0
  %1891 = vmatpush1.msra.mxu0 0.0
  %1892 = vmatprep.subr.mxu0 0.0
  %1893 = vmatpush1.msra.mxu0 0.0
  %1894 = vmatprep.subr.mxu0 0.0
  %1895 = vmatpush1.msra.mxu0 0.0
  %1896 = vmatprep.subr.mxu0 0.0
  %1897 = vmatpush1.msra.mxu0 0.0
  %1898 = vmatprep.subr.mxu0 0.0
  %1899 = vmatpush1.msra.mxu0 0.0
  %1900 = vmatprep.subr.mxu0 0.0
  %1901 = vmatpush1.msra.mxu0 0.0
  %1902 = vmatprep.subr.mxu0 0.0
  %1903 = vmatpush1.msra.mxu0 0.0
  %1904 = vmatprep.subr.mxu0 0.0
  %1905 = vmatpush1.msra.mxu0 0.0
  %1906 = vmatprep.subr.mxu0 0.0
  %1907 = vmatpush1.msra.mxu0 0.0
  %1908 = vmatprep.subr.mxu0 0.0
  %1909 = vmatpush1.msra.mxu0 0.0
  %1910 = vmatprep.subr.mxu0 0.0
  %1911 = vmatpush1.msra.mxu0 0.0
  %1912 = vmatprep.subr.mxu0 0.0
  %1913 = vmatpush1.msra.mxu0 0.0
  %1914 = vmatprep.subr.mxu0 0.0
  %1915 = vmatpush1.msra.mxu0 0.0
  %1916 = vmatprep.subr.mxu0 0.0
  %1917 = vmatpush1.msra.mxu0 0.0
  %1918 = vmatprep.subr.mxu0 0.0
  %1919 = vmatpush1.msra.mxu0 0.0
  %1920 = vmatprep.subr.mxu0 0.0
  %1921 = vmatpush1.msra.mxu0 0.0
  %1922 = vmatprep.subr.mxu0 0.0
  %1923 = vmatpush1.msra.mxu0 0.0
  %1924 = vmatprep.subr.mxu0 0.0
  %1925 = vmatpush1.msra.mxu0 0.0
  %1926 = vmatprep.subr.mxu0 0.0
  %1927 = vmatpush1.msra.mxu0 0.0
  %1928 = vmatprep.mubr.f32.mxu0 0.0
  %1929 = vmatmul.mubr.f32.gmra.mrb[0].mxu0 %v1859
  %v1930 = vpop.f32.mrb[0].mxu0
  %v1931 = vadd.f32 %v1857, %v1930
  %v1932 = vpop.f32.mrb[0].mxu0
  %1933 = vmatprep.mubr.f32.mxu0 0.0
  %1934 = vmatmul.mubr.f32.gmra.mrb[0].mxu0 %v1862
  %v1935 = vpop.f32.mrb[0].mxu0
  %v1936 = vadd.f32 %v1857, %v1935
  %v1937 = vpop.f32.mrb[0].mxu0
  %1938 = vdwg.mxu0
  %1939 = vst [vmem:[%s9] sm:$0xff] %v1931
  %1940 = vst [vmem:[%s9 + $0x8] sm:$0xff] %v1936
  // Predicated region
  $region34: #{transformer_lm_forward.1} parent=0 // pred_check
    _
  $region35: #{transformer_lm_forward.1} parent=0 // pred_check_branch
    %1942 = sbr.rel (0) target = $region37
  $region36: #{transformer_lm_forward.1} parent=0 // pred_region
    _
  $region37: #{transformer_lm_forward.1} parent=0 // pred_fallthru
    _
  // Predicated region
  $region38: #{transformer_lm_forward.1} parent=0 // pred_check
    _
  $region39: #{transformer_lm_forward.1} parent=0 // pred_check_branch
    %1944 = sbr.rel (0) target = $region41
  $region40: #{transformer_lm_forward.1} parent=0 // pred_region
    _
  $region41: #{transformer_lm_forward.1} parent=0 // pred_fallthru
    _

</llo_original>
